<compile_context>
chip_gen: v6e
topology: v6e:2x2x1
jax: 0.10.0
libtpu: 0.0.40
codegen_flags: <defaults>
</compile_context>

<pallas_src>
import jax
import jax.numpy as jnp
from jax.experimental import pallas as pl
from jax.experimental.pallas import tpu as pltpu

N_CLASSES = 6
LAMBDAS = (1, 2, 1, 1, 1, 1)

# TODO(synk): DiceLoss was not provided in the snippet; standard soft-dice
#             1 - (2*sum(p*t)+eps)/(sum(p)+sum(t)+eps) with eps=1e-3 assumed.
DICE_EPS = 1e-3
CE_EPS = 1e-8

# TODO(synk): the module-level `W` (6 class weights) is undefined in the snippet;
#             assumed uniform weights, normalized exactly as `W = W / W.sum()`.
W_CLASS = jnp.ones((N_CLASSES,), jnp.float32)
W_CLASS = W_CLASS / W_CLASS.sum()


def _hovernet_partials_kernel(pred_sm_ref, tgt_sm_ref,
                              pred_hv_ref, tgt_hv_ref,
                              pred_c_ref, tgt_c_ref,
                              out_ref, carry_ref):
    """Accumulates 16 lane-vector partial sums into out_ref (1, 16, W).

    Row layout (each row is a (W,) vector of partial sums, later summed in glue):
      0      : sum((pred_hv - tgt_hv)^2)                           -> La
      1      : sum((d/dW d_hv[:,0])^2)  (forward diff along W)     -> Lb (x part)
      2      : sum((d/dH d_hv[:,1])^2)  (forward diff along H,
               incl. cross-block halo terms)                       -> Lb (y part)
      3      : sum(BCE terms over semantic mask)                   -> Lc
      4..6   : dice sums for semantic mask (inter, p, t)           -> Ld
      7..9   : dice sums for class maps   (inter, p, t)            -> Lf
      10..15 : per-class sum(t * log(p + 1e-8))                    -> Le
    """
    h_idx = pl.program_id(1)

    # Zero the per-batch accumulator at the first H block of each batch element.
    @pl.when(h_idx == 0)
    def _init():
        out_ref[...] = jnp.zeros_like(out_ref)

    # ---- hover maps: La + gradient MSE (Lb) ----
    p_hv = pred_hv_ref[0].astype(jnp.float32)          # (2, Ht, W)
    t_hv = tgt_hv_ref[0].astype(jnp.float32)
    d_hv = p_hv - t_hv
    out_ref[0, 0, :] += jnp.sum(d_hv * d_hv, axis=(0, 1))

    d0 = d_hv[0]                                       # horizontal map -> grad along W
    d1 = d_hv[1]                                       # vertical map   -> grad along H
    ht, wd = d0.shape

    # TODO(synk): MSEGradLoss was not provided; assumed first-order forward
    #             difference along the given dim followed by mean-squared-error.

    # Lb (x): circular adjacent-pair sum via an XLU roll, minus the single
    # wrap-around pair (column 0 <-> column W-1).  Direction-agnostic.
    d0r = pltpu.roll(d0, wd - 1, 1)                    # lane-neighbour of d0
    gx = d0r - d0
    x_circ = jnp.sum(gx * gx, axis=0)                  # (W,) includes the wrap pair
    wrapx = d0[:, 0:1] - d0[:, wd - 1:wd]              # (Ht, 1)
    lane = jax.lax.broadcasted_iota(jnp.int32, (ht, wd), 1)
    wrapx_f = jnp.where(lane == 0, wrapx, 0.0)         # park wrap term at lane 0
    out_ref[0, 1, :] += x_circ - jnp.sum(wrapx_f * wrapx_f, axis=0)

    # Lb (y): same trick along sublanes + cross-block halo carried in scratch.
    d1r = pltpu.roll(d1, ht - 1, 0)                    # sublane-neighbour of d1
    gy = d1r - d1
    y_circ = jnp.sum(gy * gy, axis=0, keepdims=True)   # (1, W) includes the wrap pair
    top = d1[0:1, :]                                   # first row of this block
    bot = d1[ht - 1:ht, :]                             # last row of this block
    y_wrap = top - bot
    out_ref[0, 2, :] += (y_circ - y_wrap * y_wrap)[0]

    @pl.when(h_idx > 0)
    def _halo():
        # Boundary gradient between previous block's last row and this block's
        # first row (the H axis iterates sequentially, scratch persists).
        hb = top - carry_ref[...]
        out_ref[0, 2, :] += (hb * hb)[0]

    carry_ref[...] = bot

    # ---- semantic mask: BCE (Lc) + dice sums (Ld) ----
    p_sm = pred_sm_ref[0, 0].astype(jnp.float32)       # (Ht, W)
    t_sm = tgt_sm_ref[0, 0].astype(jnp.float32)
    log_p = jnp.maximum(jnp.log(p_sm), -100.0)         # torch BCELoss clamps at -100
    log_q = jnp.maximum(jnp.log(1.0 - p_sm), -100.0)
    bce = -(t_sm * log_p + (1.0 - t_sm) * log_q)
    out_ref[0, 3, :] += jnp.sum(bce, axis=0)
    out_ref[0, 4, :] += jnp.sum(p_sm * t_sm, axis=0)
    out_ref[0, 5, :] += jnp.sum(p_sm, axis=0)
    out_ref[0, 6, :] += jnp.sum(t_sm, axis=0)

    # ---- class maps: dice sums (Lf) + per-class CE (Le, single log pass) ----
    p_c = pred_c_ref[0].astype(jnp.float32)            # (6, Ht, W)
    t_c = tgt_c_ref[0].astype(jnp.float32)
    out_ref[0, 7, :] += jnp.sum(p_c * t_c, axis=(0, 1))
    out_ref[0, 8, :] += jnp.sum(p_c, axis=(0, 1))
    out_ref[0, 9, :] += jnp.sum(t_c, axis=(0, 1))

    logp_c = jnp.log(p_c + CE_EPS)                     # one EUP pass over the block
    out_ref[0, 10:16, :] += jnp.sum(t_c * logp_c, axis=1)   # (6, W)


def _pick_block_rows(h, bytes_per_row, max_block_rows=None,
                     budget_bytes=6 * 1024 * 1024):
    """Largest multiple-of-32 divisor of H whose block set fits the VMEM budget.

    Multiples of 32 keep int8 targets on their native (32, 128) tiling.  With a
    ~6 MiB per-step budget the double-buffered pipeline stays well under the
    default scoped VMEM limit on v5e/v6e/v7x.  Falls back to the full H
    (block dims == array dims is always a legal BlockSpec).
    """
    cap = h if max_block_rows is None else min(max_block_rows, h)
    best = None
    ht = 32
    while ht <= cap:
        if h % ht == 0 and ht * bytes_per_row <= budget_bytes:
            best = ht
        ht += 32
    return best if best is not None else h


def hovernet_loss(pred, target, lambdas=LAMBDAS, max_block_rows=None):
    """pred / target = (semantic_mask, hover_maps, class_maps), NCHW arrays.

    Preds are float; targets may be narrow (e.g. int8) and are cast in-kernel.
    """
    pred_sm, pred_hv, pred_c = pred
    tgt_sm, tgt_hv, tgt_c = target

    n, _, h, wd = pred_hv.shape
    inputs = (pred_sm, tgt_sm, pred_hv, tgt_hv, pred_c, tgt_c)

    bytes_per_row = wd * sum(int(a.shape[1]) * a.dtype.itemsize for a in inputs)
    ht = _pick_block_rows(h, bytes_per_row, max_block_rows)
    grid = (n, h // ht)

    def idx(ni, hi):
        return (ni, 0, hi, 0)

    in_specs = [
        pl.BlockSpec((1, 1, ht, wd), idx),              # pred_sm
        pl.BlockSpec((1, 1, ht, wd), idx),              # tgt_sm
        pl.BlockSpec((1, 2, ht, wd), idx),              # pred_hv
        pl.BlockSpec((1, 2, ht, wd), idx),              # tgt_hv
        pl.BlockSpec((1, N_CLASSES, ht, wd), idx),      # pred_c
        pl.BlockSpec((1, N_CLASSES, ht, wd), idx),      # tgt_c
    ]
    # Per-batch partial rows so the batch axis can run in parallel (megacore).
    out_specs = pl.BlockSpec((1, 16, wd), lambda ni, hi: (ni, 0, 0))

    n_pix = n * h * wd
    in_bytes = sum(a.size * a.dtype.itemsize for a in inputs)
    out_bytes = n * 16 * wd * 4
    cost = pl.CostEstimate(flops=80 * n_pix,
                           transcendentals=8 * n_pix,
                           bytes_accessed=in_bytes + out_bytes)

    partial_rows = pl.pallas_call(
        _hovernet_partials_kernel,
        out_shape=jax.ShapeDtypeStruct((n, 16, wd), jnp.float32),
        grid=grid,
        in_specs=in_specs,
        out_specs=out_specs,
        scratch_shapes=[pltpu.VMEM((1, wd), jnp.float32)],   # halo row carry
        compiler_params=pltpu.CompilerParams(
            dimension_semantics=("parallel", "arbitrary"),
            vmem_limit_bytes=32 * 1024 * 1024),
        cost_estimate=cost,
    )(*inputs)

    # Final (tiny) reductions + scalar weighting in plain JAX.
    partials = jnp.sum(partial_rows, axis=(0, 2))       # (16,)

    hv_numel = float(pred_hv.size)
    sm_numel = float(pred_sm.size)
    gx_numel = float(n * h * (wd - 1))
    gy_numel = float(n * (h - 1) * wd)
    pix = float(n_pix)

    La = partials[0] / hv_numel
    Lb = partials[1] / gx_numel + partials[2] / gy_numel
    Lc = partials[3] / sm_numel
    Ld = 1.0 - (2.0 * partials[4] + DICE_EPS) / (partials[5] + partials[6] + DICE_EPS)
    Lf = 1.0 - (2.0 * partials[7] + DICE_EPS) / (partials[8] + partials[9] + DICE_EPS)

    Le_per_class = -partials[10:16] / pix               # shape (6,), matches assert
    Le = jnp.sum(W_CLASS * Le_per_class)

    co = lambdas
    np_hv_loss = co[0] * La + co[1] * Lb + co[2] * Lc + co[3] * Ld
    return np_hv_loss + co[4] * Le + co[5] * Lf


if __name__ == "__main__":
    key = jax.random.PRNGKey(0)
    k = jax.random.split(key, 6)
    N, H, Wd = 2, 64, 128

    # Predictions (already probabilities where the torch module expects them).
    pred_sm = jax.nn.sigmoid(jax.random.normal(k[0], (N, 1, H, Wd), jnp.float32))
    pred_hv = jax.random.normal(k[1], (N, 2, H, Wd), jnp.float32)
    pred_c = jax.nn.softmax(
        jax.random.normal(k[2], (N, N_CLASSES, H, Wd), jnp.float32), axis=1)

    # Targets stay narrow (int8) and are cast to f32 inside the kernel.
    tgt_sm = (jax.random.uniform(k[3], (N, 1, H, Wd)) > 0.5).astype(jnp.int8)
    tgt_hv = jax.random.uniform(k[4], (N, 2, H, Wd), minval=-1.0, maxval=1.0)
    cls = jax.random.randint(k[5], (N, H, Wd), 0, N_CLASSES)
    tgt_c = jax.nn.one_hot(cls, N_CLASSES, axis=1).astype(jnp.int8)  # (N, 6, H, W)

    # max_block_rows=32 -> 2 H blocks per image: exercises the accumulation
    # across grid steps and the cross-block halo row for the vertical gradient.
    loss = hovernet_loss((pred_sm, pred_hv, pred_c), (tgt_sm, tgt_hv, tgt_c),
                         max_block_rows=32)
    jax.block_until_ready(loss)
    print("KERNEL_OK")
</pallas_src>

<mosaic_0001>
module attributes {stable_mosaic.version = 11 : i64} {
  func.func @_hovernet_partials_kernel(%arg0: i32, %arg1: i32, %arg2: memref<1x1x32x128xf32, #tpu.memory_space<vmem>>, %arg3: memref<1x1x32x128xi8, #tpu.memory_space<vmem>>, %arg4: memref<1x2x32x128xf32, #tpu.memory_space<vmem>>, %arg5: memref<1x2x32x128xf32, #tpu.memory_space<vmem>>, %arg6: memref<1x6x32x128xf32, #tpu.memory_space<vmem>>, %arg7: memref<1x6x32x128xi8, #tpu.memory_space<vmem>>, %arg8: memref<1x16x128xf32, #tpu.memory_space<vmem>>, %arg9: memref<1x128xf32, #tpu.memory_space<vmem>>) attributes {dimension_semantics = [#tpu.dimension_semantics<parallel>, #tpu.dimension_semantics<arbitrary>], iteration_bounds = array<i64: 2, 2>, scalar_prefetch = 0 : i64, scratch_operands = 1 : i64, tpu.core_type = #tpu.core_type<tc>, window_params = [{transform_indices = @transform_0, window_bounds = array<i64: 1, 1, 32, 128>}, {transform_indices = @transform_1, window_bounds = array<i64: 1, 1, 32, 128>}, {transform_indices = @transform_2, window_bounds = array<i64: 1, 2, 32, 128>}, {transform_indices = @transform_3, window_bounds = array<i64: 1, 2, 32, 128>}, {transform_indices = @transform_4, window_bounds = array<i64: 1, 6, 32, 128>}, {transform_indices = @transform_5, window_bounds = array<i64: 1, 6, 32, 128>}, {transform_indices = @transform_6, window_bounds = array<i64: 1, 16, 128>}]} {
    %c0_i32 = arith.constant 0 : i32
    %0 = arith.cmpi eq, %arg1, %c0_i32 : i32
    %1 = arith.extui %0 : i1 to i32
    %c0_i32_0 = arith.constant 0 : i32
    %2 = arith.cmpi ne, %1, %c0_i32_0 : i32
    scf.if %2 {
      %cst_103 = arith.constant 0.000000e+00 : f32
      %151 = vector.broadcast %cst_103 : f32 to vector<1x16x128xf32>
      %c0_104 = arith.constant 0 : index
      %c0_105 = arith.constant 0 : index
      %c0_106 = arith.constant 0 : index
      %152 = vector.load %arg8[%c0_104, %c0_105, %c0_106] : memref<1x16x128xf32, #tpu.memory_space<vmem>>, vector<1x16x128xf32>
      tpu.vector_store %arg8[%c0_104, %c0_105, %c0_106], %151 {strides = array<i32>} : memref<1x16x128xf32, #tpu.memory_space<vmem>>, vector<1x16x128xf32>,
    } else {
    }
    %c0 = arith.constant 0 : index
    %c0_1 = arith.constant 0 : index
    %c0_2 = arith.constant 0 : index
    %c0_3 = arith.constant 0 : index
    %3 = vector.load %arg4[%c0, %c0_1, %c0_2, %c0_3] : memref<1x2x32x128xf32, #tpu.memory_space<vmem>>, vector<1x2x32x128xf32>
    %4 = vector.shape_cast %3 : vector<1x2x32x128xf32> to vector<2x32x128xf32>
    %c0_4 = arith.constant 0 : index
    %c0_5 = arith.constant 0 : index
    %c0_6 = arith.constant 0 : index
    %c0_7 = arith.constant 0 : index
    %5 = vector.load %arg5[%c0_4, %c0_5, %c0_6, %c0_7] : memref<1x2x32x128xf32, #tpu.memory_space<vmem>>, vector<1x2x32x128xf32>
    %6 = vector.shape_cast %5 : vector<1x2x32x128xf32> to vector<2x32x128xf32>
    %7 = arith.subf %4, %6 : vector<2x32x128xf32>
    %c0_8 = arith.constant 0 : index
    %c0_9 = arith.constant 0 : index
    %c0_10 = arith.constant 0 : index
    %8 = vector.load %arg8[%c0_8, %c0_9, %c0_10] : memref<1x16x128xf32, #tpu.memory_space<vmem>>, vector<1x1x128xf32>
    %9 = vector.shape_cast %8 : vector<1x1x128xf32> to vector<128xf32>
    %10 = arith.mulf %7, %7 : vector<2x32x128xf32>
    %cst = arith.constant dense<0.000000e+00> : vector<128xf32>
    %11 = vector.multi_reduction <add>, %10, %cst [0, 1] : vector<2x32x128xf32> to vector<128xf32>
    %12 = arith.addf %9, %11 : vector<128xf32>
    %c0_11 = arith.constant 0 : index
    %c0_12 = arith.constant 0 : index
    %c0_13 = arith.constant 0 : index
    %13 = vector.load %arg8[%c0_11, %c0_12, %c0_13] : memref<1x16x128xf32, #tpu.memory_space<vmem>>, vector<1x1x128xf32>
    %14 = vector.shape_cast %13 : vector<1x1x128xf32> to vector<128xf32>
    %15 = vector.shape_cast %12 : vector<128xf32> to vector<1x1x128xf32>
    tpu.vector_store %arg8[%c0_11, %c0_12, %c0_13], %15 {strides = array<i32>} : memref<1x16x128xf32, #tpu.memory_space<vmem>>, vector<1x1x128xf32>,
    %16 = vector.extract_strided_slice %7 {offsets = [0, 0, 0], sizes = [1, 32, 128], strides = [1, 1, 1]} : vector<2x32x128xf32> to vector<1x32x128xf32>
    %17 = vector.shape_cast %16 : vector<1x32x128xf32> to vector<32x128xf32>
    %18 = vector.extract_strided_slice %7 {offsets = [1, 0, 0], sizes = [1, 32, 128], strides = [1, 1, 1]} : vector<2x32x128xf32> to vector<1x32x128xf32>
    %19 = vector.shape_cast %18 : vector<1x32x128xf32> to vector<32x128xf32>
    %c127_i32 = arith.constant 127 : i32
    %20 = tpu.dynamic_rotate %17 by %c127_i32 dim 1 : vector<32x128xf32>, i32 -> vector<32x128xf32>
    %21 = arith.subf %20, %17 : vector<32x128xf32>
    %22 = arith.mulf %21, %21 : vector<32x128xf32>
    %cst_14 = arith.constant dense<0.000000e+00> : vector<128xf32>
    %23 = vector.multi_reduction <add>, %22, %cst_14 [0] : vector<32x128xf32> to vector<128xf32>
    %24 = vector.extract_strided_slice %17 {offsets = [0, 0], sizes = [32, 1], strides = [1, 1]} : vector<32x128xf32> to vector<32x1xf32>
    %25 = vector.extract_strided_slice %17 {offsets = [0, 127], sizes = [32, 1], strides = [1, 1]} : vector<32x128xf32> to vector<32x1xf32>
    %26 = arith.subf %24, %25 : vector<32x1xf32>
    %27 = tpu.iota {dimensions = array<i32: 1>} : vector<32x128xi32>
    %c0_i32_15 = arith.constant 0 : i32
    %28 = vector.broadcast %c0_i32_15 : i32 to vector<32x128xi32>
    %29 = arith.cmpi eq, %27, %28 : vector<32x128xi32>
    %cst_16 = arith.constant 0.000000e+00 : f32
    %30 = vector.shape_cast %26 : vector<32x1xf32> to vector<32x1xf32>
    %31 = vector.broadcast %30 : vector<32x1xf32> to vector<32x128xf32>
    %32 = vector.broadcast %cst_16 : f32 to vector<32x128xf32>
    %33 = arith.select %29, %31, %32 : vector<32x128xi1>, vector<32x128xf32>
    %c0_17 = arith.constant 0 : index
    %c1 = arith.constant 1 : index
    %c0_18 = arith.constant 0 : index
    %34 = vector.load %arg8[%c0_17, %c1, %c0_18] : memref<1x16x128xf32, #tpu.memory_space<vmem>>, vector<1x1x128xf32>
    %35 = vector.shape_cast %34 : vector<1x1x128xf32> to vector<128xf32>
    %36 = arith.mulf %33, %33 : vector<32x128xf32>
    %cst_19 = arith.constant dense<0.000000e+00> : vector<128xf32>
    %37 = vector.multi_reduction <add>, %36, %cst_19 [0] : vector<32x128xf32> to vector<128xf32>
    %38 = arith.subf %23, %37 : vector<128xf32>
    %39 = arith.addf %35, %38 : vector<128xf32>
    %c0_20 = arith.constant 0 : index
    %c1_21 = arith.constant 1 : index
    %c0_22 = arith.constant 0 : index
    %40 = vector.load %arg8[%c0_20, %c1_21, %c0_22] : memref<1x16x128xf32, #tpu.memory_space<vmem>>, vector<1x1x128xf32>
    %41 = vector.shape_cast %40 : vector<1x1x128xf32> to vector<128xf32>
    %42 = vector.shape_cast %39 : vector<128xf32> to vector<1x1x128xf32>
    tpu.vector_store %arg8[%c0_20, %c1_21, %c0_22], %42 {strides = array<i32>} : memref<1x16x128xf32, #tpu.memory_space<vmem>>, vector<1x1x128xf32>,
    %c31_i32 = arith.constant 31 : i32
    %43 = tpu.dynamic_rotate %19 by %c31_i32 dim 0 : vector<32x128xf32>, i32 -> vector<32x128xf32>
    %44 = arith.subf %43, %19 : vector<32x128xf32>
    %45 = arith.mulf %44, %44 : vector<32x128xf32>
    %cst_23 = arith.constant dense<0.000000e+00> : vector<128xf32>
    %46 = vector.multi_reduction <add>, %45, %cst_23 [0] : vector<32x128xf32> to vector<128xf32>
    %47 = vector.shape_cast %46 : vector<128xf32> to vector<1x128xf32>
    %48 = vector.extract_strided_slice %19 {offsets = [0, 0], sizes = [1, 128], strides = [1, 1]} : vector<32x128xf32> to vector<1x128xf32>
    %49 = vector.extract_strided_slice %19 {offsets = [31, 0], sizes = [1, 128], strides = [1, 1]} : vector<32x128xf32> to vector<1x128xf32>
    %50 = arith.subf %48, %49 : vector<1x128xf32>
    %c0_24 = arith.constant 0 : index
    %c2 = arith.constant 2 : index
    %c0_25 = arith.constant 0 : index
    %51 = vector.load %arg8[%c0_24, %c2, %c0_25] : memref<1x16x128xf32, #tpu.memory_space<vmem>>, vector<1x1x128xf32>
    %52 = vector.shape_cast %51 : vector<1x1x128xf32> to vector<128xf32>
    %53 = arith.mulf %50, %50 : vector<1x128xf32>
    %54 = arith.subf %47, %53 : vector<1x128xf32>
    %55 = vector.shape_cast %54 : vector<1x128xf32> to vector<128xf32>
    %56 = arith.addf %52, %55 : vector<128xf32>
    %c0_26 = arith.constant 0 : index
    %c2_27 = arith.constant 2 : index
    %c0_28 = arith.constant 0 : index
    %57 = vector.load %arg8[%c0_26, %c2_27, %c0_28] : memref<1x16x128xf32, #tpu.memory_space<vmem>>, vector<1x1x128xf32>
    %58 = vector.shape_cast %57 : vector<1x1x128xf32> to vector<128xf32>
    %59 = vector.shape_cast %56 : vector<128xf32> to vector<1x1x128xf32>
    tpu.vector_store %arg8[%c0_26, %c2_27, %c0_28], %59 {strides = array<i32>} : memref<1x16x128xf32, #tpu.memory_space<vmem>>, vector<1x1x128xf32>,
    %c0_i32_29 = arith.constant 0 : i32
    %60 = arith.cmpi sgt, %arg1, %c0_i32_29 : i32
    %61 = arith.extui %60 : i1 to i32
    %c0_i32_30 = arith.constant 0 : i32
    %62 = arith.cmpi ne, %61, %c0_i32_30 : i32
    scf.if %62 {
      %c0_103 = arith.constant 0 : index
      %c0_104 = arith.constant 0 : index
      %151 = vector.load %arg9[%c0_103, %c0_104] : memref<1x128xf32, #tpu.memory_space<vmem>>, vector<1x128xf32>
      %152 = arith.subf %48, %151 : vector<1x128xf32>
      %c0_105 = arith.constant 0 : index
      %c2_106 = arith.constant 2 : index
      %c0_107 = arith.constant 0 : index
      %153 = vector.load %arg8[%c0_105, %c2_106, %c0_107] : memref<1x16x128xf32, #tpu.memory_space<vmem>>, vector<1x1x128xf32>
      %154 = vector.shape_cast %153 : vector<1x1x128xf32> to vector<128xf32>
      %155 = arith.mulf %152, %152 : vector<1x128xf32>
      %156 = vector.shape_cast %155 : vector<1x128xf32> to vector<128xf32>
      %157 = arith.addf %154, %156 : vector<128xf32>
      %c0_108 = arith.constant 0 : index
      %c2_109 = arith.constant 2 : index
      %c0_110 = arith.constant 0 : index
      %158 = vector.load %arg8[%c0_108, %c2_109, %c0_110] : memref<1x16x128xf32, #tpu.memory_space<vmem>>, vector<1x1x128xf32>
      %159 = vector.shape_cast %158 : vector<1x1x128xf32> to vector<128xf32>
      %160 = vector.shape_cast %157 : vector<128xf32> to vector<1x1x128xf32>
      tpu.vector_store %arg8[%c0_108, %c2_109, %c0_110], %160 {strides = array<i32>} : memref<1x16x128xf32, #tpu.memory_space<vmem>>, vector<1x1x128xf32>,
    } else {
    }
    %c0_31 = arith.constant 0 : index
    %c0_32 = arith.constant 0 : index
    %63 = vector.load %arg9[%c0_31, %c0_32] : memref<1x128xf32, #tpu.memory_space<vmem>>, vector<1x128xf32>
    tpu.vector_store %arg9[%c0_31, %c0_32], %49 {strides = array<i32>} : memref<1x128xf32, #tpu.memory_space<vmem>>, vector<1x128xf32>,
    %c0_33 = arith.constant 0 : index
    %c0_34 = arith.constant 0 : index
    %c0_35 = arith.constant 0 : index
    %c0_36 = arith.constant 0 : index
    %64 = vector.load %arg2[%c0_33, %c0_34, %c0_35, %c0_36] : memref<1x1x32x128xf32, #tpu.memory_space<vmem>>, vector<1x1x32x128xf32>
    %65 = vector.shape_cast %64 : vector<1x1x32x128xf32> to vector<32x128xf32>
    %c0_37 = arith.constant 0 : index
    %c0_38 = arith.constant 0 : index
    %c0_39 = arith.constant 0 : index
    %c0_40 = arith.constant 0 : index
    %66 = vector.load %arg3[%c0_37, %c0_38, %c0_39, %c0_40] : memref<1x1x32x128xi8, #tpu.memory_space<vmem>>, vector<1x1x32x128xi8>
    %67 = vector.shape_cast %66 : vector<1x1x32x128xi8> to vector<32x128xi8>
    %68 = arith.sitofp %67 : vector<32x128xi8> to vector<32x128xf32>
    %69 = math.log %65 : vector<32x128xf32>
    %cst_41 = arith.constant -1.000000e+02 : f32
    %70 = vector.broadcast %cst_41 : f32 to vector<32x128xf32>
    %71 = arith.maximumf %69, %70 : vector<32x128xf32>
    %cst_42 = arith.constant 1.000000e+00 : f32
    %72 = vector.broadcast %cst_42 : f32 to vector<32x128xf32>
    %73 = arith.subf %72, %65 : vector<32x128xf32>
    %74 = math.log %73 : vector<32x128xf32>
    %cst_43 = arith.constant -1.000000e+02 : f32
    %75 = vector.broadcast %cst_43 : f32 to vector<32x128xf32>
    %76 = arith.maximumf %74, %75 : vector<32x128xf32>
    %77 = arith.mulf %68, %71 : vector<32x128xf32>
    %cst_44 = arith.constant 1.000000e+00 : f32
    %78 = vector.broadcast %cst_44 : f32 to vector<32x128xf32>
    %79 = arith.subf %78, %68 : vector<32x128xf32>
    %80 = arith.mulf %79, %76 : vector<32x128xf32>
    %81 = arith.addf %77, %80 : vector<32x128xf32>
    %cst_45 = arith.constant 0.000000e+00 : f32
    %82 = vector.broadcast %cst_45 : f32 to vector<32x128xf32>
    %83 = arith.subf %82, %81 : vector<32x128xf32>
    %c0_46 = arith.constant 0 : index
    %c3 = arith.constant 3 : index
    %c0_47 = arith.constant 0 : index
    %84 = vector.load %arg8[%c0_46, %c3, %c0_47] : memref<1x16x128xf32, #tpu.memory_space<vmem>>, vector<1x1x128xf32>
    %85 = vector.shape_cast %84 : vector<1x1x128xf32> to vector<128xf32>
    %cst_48 = arith.constant dense<0.000000e+00> : vector<128xf32>
    %86 = vector.multi_reduction <add>, %83, %cst_48 [0] : vector<32x128xf32> to vector<128xf32>
    %87 = arith.addf %85, %86 : vector<128xf32>
    %c0_49 = arith.constant 0 : index
    %c3_50 = arith.constant 3 : index
    %c0_51 = arith.constant 0 : index
    %88 = vector.load %arg8[%c0_49, %c3_50, %c0_51] : memref<1x16x128xf32, #tpu.memory_space<vmem>>, vector<1x1x128xf32>
    %89 = vector.shape_cast %88 : vector<1x1x128xf32> to vector<128xf32>
    %90 = vector.shape_cast %87 : vector<128xf32> to vector<1x1x128xf32>
    tpu.vector_store %arg8[%c0_49, %c3_50, %c0_51], %90 {strides = array<i32>} : memref<1x16x128xf32, #tpu.memory_space<vmem>>, vector<1x1x128xf32>,
    %c0_52 = arith.constant 0 : index
    %c4 = arith.constant 4 : index
    %c0_53 = arith.constant 0 : index
    %91 = vector.load %arg8[%c0_52, %c4, %c0_53] : memref<1x16x128xf32, #tpu.memory_space<vmem>>, vector<1x1x128xf32>
    %92 = vector.shape_cast %91 : vector<1x1x128xf32> to vector<128xf32>
    %93 = arith.mulf %65, %68 : vector<32x128xf32>
    %cst_54 = arith.constant dense<0.000000e+00> : vector<128xf32>
    %94 = vector.multi_reduction <add>, %93, %cst_54 [0] : vector<32x128xf32> to vector<128xf32>
    %95 = arith.addf %92, %94 : vector<128xf32>
    %c0_55 = arith.constant 0 : index
    %c4_56 = arith.constant 4 : index
    %c0_57 = arith.constant 0 : index
    %96 = vector.load %arg8[%c0_55, %c4_56, %c0_57] : memref<1x16x128xf32, #tpu.memory_space<vmem>>, vector<1x1x128xf32>
    %97 = vector.shape_cast %96 : vector<1x1x128xf32> to vector<128xf32>
    %98 = vector.shape_cast %95 : vector<128xf32> to vector<1x1x128xf32>
    tpu.vector_store %arg8[%c0_55, %c4_56, %c0_57], %98 {strides = array<i32>} : memref<1x16x128xf32, #tpu.memory_space<vmem>>, vector<1x1x128xf32>,
    %c0_58 = arith.constant 0 : index
    %c5 = arith.constant 5 : index
    %c0_59 = arith.constant 0 : index
    %99 = vector.load %arg8[%c0_58, %c5, %c0_59] : memref<1x16x128xf32, #tpu.memory_space<vmem>>, vector<1x1x128xf32>
    %100 = vector.shape_cast %99 : vector<1x1x128xf32> to vector<128xf32>
    %cst_60 = arith.constant dense<0.000000e+00> : vector<128xf32>
    %101 = vector.multi_reduction <add>, %65, %cst_60 [0] : vector<32x128xf32> to vector<128xf32>
    %102 = arith.addf %100, %101 : vector<128xf32>
    %c0_61 = arith.constant 0 : index
    %c5_62 = arith.constant 5 : index
    %c0_63 = arith.constant 0 : index
    %103 = vector.load %arg8[%c0_61, %c5_62, %c0_63] : memref<1x16x128xf32, #tpu.memory_space<vmem>>, vector<1x1x128xf32>
    %104 = vector.shape_cast %103 : vector<1x1x128xf32> to vector<128xf32>
    %105 = vector.shape_cast %102 : vector<128xf32> to vector<1x1x128xf32>
    tpu.vector_store %arg8[%c0_61, %c5_62, %c0_63], %105 {strides = array<i32>} : memref<1x16x128xf32, #tpu.memory_space<vmem>>, vector<1x1x128xf32>,
    %c0_64 = arith.constant 0 : index
    %c6 = arith.constant 6 : index
    %c0_65 = arith.constant 0 : index
    %106 = vector.load %arg8[%c0_64, %c6, %c0_65] : memref<1x16x128xf32, #tpu.memory_space<vmem>>, vector<1x1x128xf32>
    %107 = vector.shape_cast %106 : vector<1x1x128xf32> to vector<128xf32>
    %cst_66 = arith.constant dense<0.000000e+00> : vector<128xf32>
    %108 = vector.multi_reduction <add>, %68, %cst_66 [0] : vector<32x128xf32> to vector<128xf32>
    %109 = arith.addf %107, %108 : vector<128xf32>
    %c0_67 = arith.constant 0 : index
    %c6_68 = arith.constant 6 : index
    %c0_69 = arith.constant 0 : index
    %110 = vector.load %arg8[%c0_67, %c6_68, %c0_69] : memref<1x16x128xf32, #tpu.memory_space<vmem>>, vector<1x1x128xf32>
    %111 = vector.shape_cast %110 : vector<1x1x128xf32> to vector<128xf32>
    %112 = vector.shape_cast %109 : vector<128xf32> to vector<1x1x128xf32>
    tpu.vector_store %arg8[%c0_67, %c6_68, %c0_69], %112 {strides = array<i32>} : memref<1x16x128xf32, #tpu.memory_space<vmem>>, vector<1x1x128xf32>,
    %c0_70 = arith.constant 0 : index
    %c0_71 = arith.constant 0 : index
    %c0_72 = arith.constant 0 : index
    %c0_73 = arith.constant 0 : index
    %113 = vector.load %arg6[%c0_70, %c0_71, %c0_72, %c0_73] : memref<1x6x32x128xf32, #tpu.memory_space<vmem>>, vector<1x6x32x128xf32>
    %114 = vector.shape_cast %113 : vector<1x6x32x128xf32> to vector<6x32x128xf32>
    %c0_74 = arith.constant 0 : index
    %c0_75 = arith.constant 0 : index
    %c0_76 = arith.constant 0 : index
    %c0_77 = arith.constant 0 : index
    %115 = vector.load %arg7[%c0_74, %c0_75, %c0_76, %c0_77] : memref<1x6x32x128xi8, #tpu.memory_space<vmem>>, vector<1x6x32x128xi8>
    %116 = vector.shape_cast %115 : vector<1x6x32x128xi8> to vector<6x32x128xi8>
    %117 = arith.sitofp %116 : vector<6x32x128xi8> to vector<6x32x128xf32>
    %c0_78 = arith.constant 0 : index
    %c7 = arith.constant 7 : index
    %c0_79 = arith.constant 0 : index
    %118 = vector.load %arg8[%c0_78, %c7, %c0_79] : memref<1x16x128xf32, #tpu.memory_space<vmem>>, vector<1x1x128xf32>
    %119 = vector.shape_cast %118 : vector<1x1x128xf32> to vector<128xf32>
    %120 = arith.mulf %114, %117 : vector<6x32x128xf32>
    %cst_80 = arith.constant dense<0.000000e+00> : vector<128xf32>
    %121 = vector.multi_reduction <add>, %120, %cst_80 [0, 1] : vector<6x32x128xf32> to vector<128xf32>
    %122 = arith.addf %119, %121 : vector<128xf32>
    %c0_81 = arith.constant 0 : index
    %c7_82 = arith.constant 7 : index
    %c0_83 = arith.constant 0 : index
    %123 = vector.load %arg8[%c0_81, %c7_82, %c0_83] : memref<1x16x128xf32, #tpu.memory_space<vmem>>, vector<1x1x128xf32>
    %124 = vector.shape_cast %123 : vector<1x1x128xf32> to vector<128xf32>
    %125 = vector.shape_cast %122 : vector<128xf32> to vector<1x1x128xf32>
    tpu.vector_store %arg8[%c0_81, %c7_82, %c0_83], %125 {strides = array<i32>} : memref<1x16x128xf32, #tpu.memory_space<vmem>>, vector<1x1x128xf32>,
    %c0_84 = arith.constant 0 : index
    %c8 = arith.constant 8 : index
    %c0_85 = arith.constant 0 : index
    %126 = vector.load %arg8[%c0_84, %c8, %c0_85] : memref<1x16x128xf32, #tpu.memory_space<vmem>>, vector<1x1x128xf32>
    %127 = vector.shape_cast %126 : vector<1x1x128xf32> to vector<128xf32>
    %cst_86 = arith.constant dense<0.000000e+00> : vector<128xf32>
    %128 = vector.multi_reduction <add>, %114, %cst_86 [0, 1] : vector<6x32x128xf32> to vector<128xf32>
    %129 = arith.addf %127, %128 : vector<128xf32>
    %c0_87 = arith.constant 0 : index
    %c8_88 = arith.constant 8 : index
    %c0_89 = arith.constant 0 : index
    %130 = vector.load %arg8[%c0_87, %c8_88, %c0_89] : memref<1x16x128xf32, #tpu.memory_space<vmem>>, vector<1x1x128xf32>
    %131 = vector.shape_cast %130 : vector<1x1x128xf32> to vector<128xf32>
    %132 = vector.shape_cast %129 : vector<128xf32> to vector<1x1x128xf32>
    tpu.vector_store %arg8[%c0_87, %c8_88, %c0_89], %132 {strides = array<i32>} : memref<1x16x128xf32, #tpu.memory_space<vmem>>, vector<1x1x128xf32>,
    %c0_90 = arith.constant 0 : index
    %c9 = arith.constant 9 : index
    %c0_91 = arith.constant 0 : index
    %133 = vector.load %arg8[%c0_90, %c9, %c0_91] : memref<1x16x128xf32, #tpu.memory_space<vmem>>, vector<1x1x128xf32>
    %134 = vector.shape_cast %133 : vector<1x1x128xf32> to vector<128xf32>
    %cst_92 = arith.constant dense<0.000000e+00> : vector<128xf32>
    %135 = vector.multi_reduction <add>, %117, %cst_92 [0, 1] : vector<6x32x128xf32> to vector<128xf32>
    %136 = arith.addf %134, %135 : vector<128xf32>
    %c0_93 = arith.constant 0 : index
    %c9_94 = arith.constant 9 : index
    %c0_95 = arith.constant 0 : index
    %137 = vector.load %arg8[%c0_93, %c9_94, %c0_95] : memref<1x16x128xf32, #tpu.memory_space<vmem>>, vector<1x1x128xf32>
    %138 = vector.shape_cast %137 : vector<1x1x128xf32> to vector<128xf32>
    %139 = vector.shape_cast %136 : vector<128xf32> to vector<1x1x128xf32>
    tpu.vector_store %arg8[%c0_93, %c9_94, %c0_95], %139 {strides = array<i32>} : memref<1x16x128xf32, #tpu.memory_space<vmem>>, vector<1x1x128xf32>,
    %cst_96 = arith.constant 9.99999993E-9 : f32
    %140 = vector.broadcast %cst_96 : f32 to vector<6x32x128xf32>
    %141 = arith.addf %114, %140 : vector<6x32x128xf32>
    %142 = math.log %141 : vector<6x32x128xf32>
    %c0_97 = arith.constant 0 : index
    %c10 = arith.constant 10 : index
    %c0_98 = arith.constant 0 : index
    %143 = vector.load %arg8[%c0_97, %c10, %c0_98] : memref<1x16x128xf32, #tpu.memory_space<vmem>>, vector<1x6x128xf32>
    %144 = vector.shape_cast %143 : vector<1x6x128xf32> to vector<6x128xf32>
    %145 = arith.mulf %117, %142 : vector<6x32x128xf32>
    %cst_99 = arith.constant dense<0.000000e+00> : vector<6x128xf32>
    %146 = vector.multi_reduction <add>, %145, %cst_99 [1] : vector<6x32x128xf32> to vector<6x128xf32>
    %147 = arith.addf %144, %146 : vector<6x128xf32>
    %c0_100 = arith.constant 0 : index
    %c10_101 = arith.constant 10 : index
    %c0_102 = arith.constant 0 : index
    %148 = vector.load %arg8[%c0_100, %c10_101, %c0_102] : memref<1x16x128xf32, #tpu.memory_space<vmem>>, vector<1x6x128xf32>
    %149 = vector.shape_cast %148 : vector<1x6x128xf32> to vector<6x128xf32>
    %150 = vector.shape_cast %147 : vector<6x128xf32> to vector<1x6x128xf32>
    tpu.vector_store %arg8[%c0_100, %c10_101, %c0_102], %150 {strides = array<i32>} : memref<1x16x128xf32, #tpu.memory_space<vmem>>, vector<1x6x128xf32>,
    return
  }
  func.func @transform_0(%arg0: i32, %arg1: i32) -> (i32, i32, i32, i32) {
    %c0_i32 = arith.constant 0 : i32
    %c0_i32_0 = arith.constant 0 : i32
    %c0_i32_1 = arith.constant 0 : i32
    return %arg0, %c0_i32, %arg1, %c0_i32_0 : i32, i32, i32, i32
  }
  func.func @transform_1(%arg0: i32, %arg1: i32) -> (i32, i32, i32, i32) {
    %c0_i32 = arith.constant 0 : i32
    %c0_i32_0 = arith.constant 0 : i32
    %c0_i32_1 = arith.constant 0 : i32
    return %arg0, %c0_i32, %arg1, %c0_i32_0 : i32, i32, i32, i32
  }
  func.func @transform_2(%arg0: i32, %arg1: i32) -> (i32, i32, i32, i32) {
    %c0_i32 = arith.constant 0 : i32
    %c0_i32_0 = arith.constant 0 : i32
    %c0_i32_1 = arith.constant 0 : i32
    return %arg0, %c0_i32, %arg1, %c0_i32_0 : i32, i32, i32, i32
  }
  func.func @transform_3(%arg0: i32, %arg1: i32) -> (i32, i32, i32, i32) {
    %c0_i32 = arith.constant 0 : i32
    %c0_i32_0 = arith.constant 0 : i32
    %c0_i32_1 = arith.constant 0 : i32
    return %arg0, %c0_i32, %arg1, %c0_i32_0 : i32, i32, i32, i32
  }
  func.func @transform_4(%arg0: i32, %arg1: i32) -> (i32, i32, i32, i32) {
    %c0_i32 = arith.constant 0 : i32
    %c0_i32_0 = arith.constant 0 : i32
    %c0_i32_1 = arith.constant 0 : i32
    return %arg0, %c0_i32, %arg1, %c0_i32_0 : i32, i32, i32, i32
  }
  func.func @transform_5(%arg0: i32, %arg1: i32) -> (i32, i32, i32, i32) {
    %c0_i32 = arith.constant 0 : i32
    %c0_i32_0 = arith.constant 0 : i32
    %c0_i32_1 = arith.constant 0 : i32
    return %arg0, %c0_i32, %arg1, %c0_i32_0 : i32, i32, i32, i32
  }
  func.func @transform_6(%arg0: i32, %arg1: i32) -> (i32, i32, i32) {
    %c0_i32 = arith.constant 0 : i32
    %c0_i32_0 = arith.constant 0 : i32
    %c0_i32_1 = arith.constant 0 : i32
    return %arg0, %c0_i32, %c0_i32_0 : i32, i32, i32
  }
}

</mosaic_0001>

<llo_original>
// kernel: tpu_custom_call.1
$region0: #{tpu_custom_call.1}
  #allocation0 [shape = 'u32[]', space=smem, size = 0x4, offset = 0x4, fixed_abs, tag = 'smem constant byte address 0x4 - core index']
  #allocation1 [shape = 'u32[144,128]{1,0:T(1,128)}', space=vmem, size = 0x12000, scoped, tag = 'internal scratch']
  #allocation2 [shape = 'f32[1,128]{1,0:T(1,128)}', space=vmem, size = 0x200, scoped, tag = 'scratch operand']
  #allocation15 [shape = 's32[]', space=sflag, size = 0x4, offset = 0, fixed_abs, tag = 'sflag constant byte address 0x0 - dummy sync flag']
  #allocation17 [shape = 's32[]', space=sflag, size = 0x4, offset = 0, fixed_abs, tag = 'sflag constant byte address 0x0 - dummy sync flag']
  #allocation19 [shape = 's32[]', space=sflag, size = 0x4, offset = 0, fixed_abs, tag = 'sflag constant byte address 0x0 - dummy sync flag']
  %s0 = inlined_call_operand.hbm [shape: f32[2,1,64,128], index: 0, kind: input, shape index: {}]
  %s1 = inlined_call_operand.hbm [shape: s8[2,1,64,128], index: 1, kind: input, shape index: {}]
  %s2 = inlined_call_operand.hbm [shape: f32[2,2,64,128], index: 2, kind: input, shape index: {}]
  %s3 = inlined_call_operand.hbm [shape: f32[2,2,64,128], index: 3, kind: input, shape index: {}]
  %s4 = inlined_call_operand.hbm [shape: f32[2,6,64,128], index: 4, kind: input, shape index: {}]
  %s5 = inlined_call_operand.hbm [shape: s8[2,6,64,128], index: 5, kind: input, shape index: {}]
  %s6 = inlined_call_operand.hbm [shape: f32[2,16,128], index: 6, kind: output, shape index: {}]
  %s7 = sld [smem:[#allocation0]]
  $region89: #{tpu_custom_call.1} parent=0
    _
  %s9 = ssub.s32 1, %s7
  %s10 = scalar_select 0, %s9, %s7
  $region1: #{tpu_custom_call.1} parent=0
    #allocation3 [shape = 'u8[32768]{0}', space=vmem, size = 0x8000, scoped, tag = 'input window, operand 0']
    #allocation4 [shape = 's32[2]{0}', space=sflag, size = 0x8, scoped, tag = 'scoped memory for tpu_custom_call.1']
    #allocation5 [shape = 's32[2]{0}', space=sflag, size = 0x8, scoped, tag = 'scoped memory for tpu_custom_call.1']
    #allocation6 [shape = 'u8[8192]{0}', space=vmem, size = 0x2000, scoped, tag = 'input window, operand 1']
    #allocation7 [shape = 's32[2]{0}', space=sflag, size = 0x8, scoped, tag = 'scoped memory for tpu_custom_call.1']
    #allocation8 [shape = 'u8[65536]{0}', space=vmem, size = 0x10000, scoped, tag = 'input window, operand 2']
    #allocation9 [shape = 'u8[65536]{0}', space=vmem, size = 0x10000, scoped, tag = 'input window, operand 3']
    #allocation10 [shape = 's32[2]{0}', space=sflag, size = 0x8, scoped, tag = 'scoped memory for tpu_custom_call.1']
    #allocation11 [shape = 'u8[196608]{0}', space=vmem, size = 0x30000, scoped, tag = 'input window, operand 4']
    #allocation12 [shape = 'u8[49152]{0}', space=vmem, size = 0xc000, scoped, tag = 'input window, operand 5']
    #allocation13 [shape = 's32[2]{0}', space=sflag, size = 0x8, scoped, tag = 'scoped memory for tpu_custom_call.1']
    #allocation14 [shape = 'u8[16384]{0}', space=vmem, size = 0x4000, scoped, tag = 'output window, operand 0']
    %11 = vsyncpa [#allocation4], 0
    %s12 = scalar_lea.sflag [#allocation4], 1
    %13 = vsyncpa %s12, 0
    %14 = vsyncpa [#allocation7], 0
    %s15 = scalar_lea.sflag [#allocation7], 1
    %16 = vsyncpa %s15, 0
    %17 = vsyncpa [#allocation10], 0
    %s18 = scalar_lea.sflag [#allocation10], 1
    %19 = vsyncpa %s18, 0
    %20 = vsyncpa [#allocation13], 0
    %s21 = scalar_lea.sflag [#allocation13], 1
    %22 = vsyncpa %s21, 0
    %23 = vsyncpa [#allocation5], 0
    %s24 = scalar_lea.sflag [#allocation5], 1
    %25 = vsyncpa %s24, 0
    loop: start=0, step=1, limit=6
    $region2: #{tpu_custom_call.1} parent=1 // loop_pre_header
      _
    $region3: #{tpu_custom_call.1} parent=1 // loop_header
      %s27 = sphi 0, %s31
      %p28 = scmp.ge.s32.totalorder %s27, 6
      %s34 = sphi 0, %s46
      %s35 = sphi 0, %s42
      %s36 = sphi 0, %s34
      %s37 = sphi 0, %s35
      %s38 = sphi 0, %s36
      %s39 = sphi 0, %s37
      %s51 = sphi 0, %s53
      %s54 = sphi 0, %s51
      %s55 = sphi 0, %s54
      %s71 = sphi 0, %s55
      %s79 = sphi 0, %s81
      %s82 = sphi 0, %s79
      %s83 = sphi 0, %s82
      %s99 = sphi 0, %s83
      %s107 = sphi 0, %s109
      %s110 = sphi 0, %s107
      %s111 = sphi 0, %s110
      %s127 = sphi 0, %s111
      %s135 = sphi 0, %s137
      %s138 = sphi 0, %s135
      %s139 = sphi 0, %s138
      %s155 = sphi 0, %s139
      %s163 = sphi 0, %s165
      %s166 = sphi 0, %s163
      %s167 = sphi 0, %s166
      %s183 = sphi 0, %s167
      %s191 = sphi 0, %s193
      %s194 = sphi 0, %s191
      %s195 = sphi 0, %s194
      %s211 = sphi 0, %s195
      %s217 = sphi 0, %s219
      %s220 = sphi 0, %s217
      %s221 = sphi 0, %s220
      %s237 = sphi 0, %s221
    $region4: #{tpu_custom_call.1} parent=1 // loop_header_branch
      %30 = sbr.rel (%p28) target = $region8
    $region5: #{tpu_custom_call.1} parent=1 // loop_body
      %s32 = ssub.s32 %s27, 1
      %s33 = ssub.s32 %s27, 2
      %s40 = sadd.s32 1, %s35
      %p41 = scmp.ge.s32.totalorder %s40, 2
      %s42 = scalar_select %p41, 0, %s40
      %s43 = sadd.s32 1, %s34
      %s44 = scalar_select %p41, %s43, %s34
      %p45 = scmp.ge.s32.totalorder %s44, 2
      %s46 = scalar_select %p45, 0, %s44
      %s47 = ssub.s32 %s34, %s46
      %s48 = ssub.s32 %s35, %s42
      %s49 = sor.u32 %s47, %s48
      %p50 = scmp.eq.s32.totalorder %s49, 0
      %s52 = sadd.s32 %s51, 1
      %s53 = scalar_select %p50, %s51, %s52
      %p56 = pneg %p50
      %p57 = scmp.eq.s32.totalorder %s27, 3
      %p58 = por %p56, %p57
      %p59 = scmp.ne.s32.totalorder %s51, %s54
      %p60 = scmp.eq.s32.totalorder %s27, 0
      %p61 = por %p59, %p60
      %p62 = scmp.ne.s32.totalorder %s51, %s54
      %p63 = scmp.eq.s32.totalorder %s32, 3
      %p64 = por %p62, %p63
      %p65 = scmp.ne.s32.totalorder %s54, %s55
      %p66 = scmp.eq.s32.totalorder %s32, 0
      %p67 = por %p65, %p66
      %p68 = scmp.ne.s32.totalorder %s54, %s55
      %p69 = scmp.eq.s32.totalorder %s33, 3
      %p70 = por %p68, %p69
      %p72 = scmp.ne.s32.totalorder %s55, %s71
      %p73 = scmp.eq.s32.totalorder %s33, 0
      %p74 = por %p72, %p73
      %s75 = ssub.s32 %s34, %s46
      %s76 = ssub.s32 %s35, %s42
      %s77 = sor.u32 %s75, %s76
      %p78 = scmp.eq.s32.totalorder %s77, 0
      %s80 = sadd.s32 %s79, 1
      %s81 = scalar_select %p78, %s79, %s80
      %p84 = pneg %p78
      %p85 = scmp.eq.s32.totalorder %s27, 3
      %p86 = por %p84, %p85
      %p87 = scmp.ne.s32.totalorder %s79, %s82
      %p88 = scmp.eq.s32.totalorder %s27, 0
      %p89 = por %p87, %p88
      %p90 = scmp.ne.s32.totalorder %s79, %s82
      %p91 = scmp.eq.s32.totalorder %s32, 3
      %p92 = por %p90, %p91
      %p93 = scmp.ne.s32.totalorder %s82, %s83
      %p94 = scmp.eq.s32.totalorder %s32, 0
      %p95 = por %p93, %p94
      %p96 = scmp.ne.s32.totalorder %s82, %s83
      %p97 = scmp.eq.s32.totalorder %s33, 3
      %p98 = por %p96, %p97
      %p100 = scmp.ne.s32.totalorder %s83, %s99
      %p101 = scmp.eq.s32.totalorder %s33, 0
      %p102 = por %p100, %p101
      %s103 = ssub.s32 %s34, %s46
      %s104 = ssub.s32 %s35, %s42
      %s105 = sor.u32 %s103, %s104
      %p106 = scmp.eq.s32.totalorder %s105, 0
      %s108 = sadd.s32 %s107, 1
      %s109 = scalar_select %p106, %s107, %s108
      %p112 = pneg %p106
      %p113 = scmp.eq.s32.totalorder %s27, 3
      %p114 = por %p112, %p113
      %p115 = scmp.ne.s32.totalorder %s107, %s110
      %p116 = scmp.eq.s32.totalorder %s27, 0
      %p117 = por %p115, %p116
      %p118 = scmp.ne.s32.totalorder %s107, %s110
      %p119 = scmp.eq.s32.totalorder %s32, 3
      %p120 = por %p118, %p119
      %p121 = scmp.ne.s32.totalorder %s110, %s111
      %p122 = scmp.eq.s32.totalorder %s32, 0
      %p123 = por %p121, %p122
      %p124 = scmp.ne.s32.totalorder %s110, %s111
      %p125 = scmp.eq.s32.totalorder %s33, 3
      %p126 = por %p124, %p125
      %p128 = scmp.ne.s32.totalorder %s111, %s127
      %p129 = scmp.eq.s32.totalorder %s33, 0
      %p130 = por %p128, %p129
      %s131 = ssub.s32 %s34, %s46
      %s132 = ssub.s32 %s35, %s42
      %s133 = sor.u32 %s131, %s132
      %p134 = scmp.eq.s32.totalorder %s133, 0
      %s136 = sadd.s32 %s135, 1
      %s137 = scalar_select %p134, %s135, %s136
      %p140 = pneg %p134
      %p141 = scmp.eq.s32.totalorder %s27, 3
      %p142 = por %p140, %p141
      %p143 = scmp.ne.s32.totalorder %s135, %s138
      %p144 = scmp.eq.s32.totalorder %s27, 0
      %p145 = por %p143, %p144
      %p146 = scmp.ne.s32.totalorder %s135, %s138
      %p147 = scmp.eq.s32.totalorder %s32, 3
      %p148 = por %p146, %p147
      %p149 = scmp.ne.s32.totalorder %s138, %s139
      %p150 = scmp.eq.s32.totalorder %s32, 0
      %p151 = por %p149, %p150
      %p152 = scmp.ne.s32.totalorder %s138, %s139
      %p153 = scmp.eq.s32.totalorder %s33, 3
      %p154 = por %p152, %p153
      %p156 = scmp.ne.s32.totalorder %s139, %s155
      %p157 = scmp.eq.s32.totalorder %s33, 0
      %p158 = por %p156, %p157
      %s159 = ssub.s32 %s34, %s46
      %s160 = ssub.s32 %s35, %s42
      %s161 = sor.u32 %s159, %s160
      %p162 = scmp.eq.s32.totalorder %s161, 0
      %s164 = sadd.s32 %s163, 1
      %s165 = scalar_select %p162, %s163, %s164
      %p168 = pneg %p162
      %p169 = scmp.eq.s32.totalorder %s27, 3
      %p170 = por %p168, %p169
      %p171 = scmp.ne.s32.totalorder %s163, %s166
      %p172 = scmp.eq.s32.totalorder %s27, 0
      %p173 = por %p171, %p172
      %p174 = scmp.ne.s32.totalorder %s163, %s166
      %p175 = scmp.eq.s32.totalorder %s32, 3
      %p176 = por %p174, %p175
      %p177 = scmp.ne.s32.totalorder %s166, %s167
      %p178 = scmp.eq.s32.totalorder %s32, 0
      %p179 = por %p177, %p178
      %p180 = scmp.ne.s32.totalorder %s166, %s167
      %p181 = scmp.eq.s32.totalorder %s33, 3
      %p182 = por %p180, %p181
      %p184 = scmp.ne.s32.totalorder %s167, %s183
      %p185 = scmp.eq.s32.totalorder %s33, 0
      %p186 = por %p184, %p185
      %s187 = ssub.s32 %s34, %s46
      %s188 = ssub.s32 %s35, %s42
      %s189 = sor.u32 %s187, %s188
      %p190 = scmp.eq.s32.totalorder %s189, 0
      %s192 = sadd.s32 %s191, 1
      %s193 = scalar_select %p190, %s191, %s192
      %p196 = pneg %p190
      %p197 = scmp.eq.s32.totalorder %s27, 3
      %p198 = por %p196, %p197
      %p199 = scmp.ne.s32.totalorder %s191, %s194
      %p200 = scmp.eq.s32.totalorder %s27, 0
      %p201 = por %p199, %p200
      %p202 = scmp.ne.s32.totalorder %s191, %s194
      %p203 = scmp.eq.s32.totalorder %s32, 3
      %p204 = por %p202, %p203
      %p205 = scmp.ne.s32.totalorder %s194, %s195
      %p206 = scmp.eq.s32.totalorder %s32, 0
      %p207 = por %p205, %p206
      %p208 = scmp.ne.s32.totalorder %s194, %s195
      %p209 = scmp.eq.s32.totalorder %s33, 3
      %p210 = por %p208, %p209
      %p212 = scmp.ne.s32.totalorder %s195, %s211
      %p213 = scmp.eq.s32.totalorder %s33, 0
      %p214 = por %p212, %p213
      %s215 = ssub.s32 %s34, %s46
      %p216 = scmp.eq.s32.totalorder %s215, 0
      %s218 = sadd.s32 %s217, 1
      %s219 = scalar_select %p216, %s217, %s218
      %p222 = pneg %p216
      %p223 = scmp.eq.s32.totalorder %s27, 3
      %p224 = por %p222, %p223
      %p225 = scmp.ne.s32.totalorder %s217, %s220
      %p226 = scmp.eq.s32.totalorder %s27, 0
      %p227 = por %p225, %p226
      %p228 = scmp.ne.s32.totalorder %s217, %s220
      %p229 = scmp.eq.s32.totalorder %s32, 3
      %p230 = por %p228, %p229
      %p231 = scmp.ne.s32.totalorder %s220, %s221
      %p232 = scmp.eq.s32.totalorder %s32, 0
      %p233 = por %p231, %p232
      %p234 = scmp.ne.s32.totalorder %s220, %s221
      %p235 = scmp.eq.s32.totalorder %s33, 3
      %p236 = por %p234, %p235
      %p238 = scmp.ne.s32.totalorder %s221, %s237
      %p239 = scmp.eq.s32.totalorder %s33, 0
      %p240 = por %p238, %p239
      %p241 = scmp.le.s32.totalorder 1, %s27
      %p242 = scmp.lt.s32.totalorder %s27, 5
      %p243 = pnand %p241, %p242
      %p244 = pneg %p243
      // Predicated region
      $region9: #{tpu_custom_call.1} parent=5 // pred_check
        _
      $region10: #{tpu_custom_call.1} parent=5 // pred_check_branch
        %246 = sbr.rel (%p243) target = $region12
      $region11: #{tpu_custom_call.1} parent=5 // pred_region
        %s247 = ssub.s32 %s27, 1
      $region12: #{tpu_custom_call.1} parent=5 // pred_fallthru
        _
      %p248 = scmp.lt.s32.totalorder %s27, 4
      // Predicated region
      $region13: #{tpu_custom_call.1} parent=5 // pred_check
        %p249 = pneg %p248
      $region14: #{tpu_custom_call.1} parent=5 // pred_check_branch
        %251 = sbr.rel (%p249) target = $region16
      $region15: #{tpu_custom_call.1} parent=5 // pred_region
        // Predicated region
        $region17: #{tpu_custom_call.1} parent=15 // pred_check
          %p252 = pneg %p61
        $region18: #{tpu_custom_call.1} parent=15 // pred_check_branch
          %254 = sbr.rel (%p252) target = $region20
        $region19: #{tpu_custom_call.1} parent=15 // pred_region
          %s255 = sand.u32 %s51, 1
          %s256 = scalar_lea.sflag [#allocation4], %s255
          %s257 = sand.u32 %s51, 1
          %s258 = smul.addr %s257, 32
          %s259 = scalar_lea.vmem [#allocation3], %s258
          %s260 = smul.u32 4, %s35
          %s262 = ssub.s32 512, 512
          %263 = vsyncadd %s256, %s262
          %s264 = smul.addr %s34, 8
          %s265 = sadd.s32 %s260, %s264
          %s266 = smul.addr %s265, 128
          %s267 = scalar_lea.hbm %s0, %s266
          %s268 = sshll.u32 %s259, 4
          %s269 = int_to_ptr.vmem [resolvable:$true] %s268
          %274 = dma.hbm_to_vmem [thread:$0]  %s267, 512, %s269, %s256, 128, 128, 8
        $region20: #{tpu_custom_call.1} parent=15 // pred_fallthru
          _
        // Predicated region
        $region21: #{tpu_custom_call.1} parent=15 // pred_check
          %p275 = pneg %p89
        $region22: #{tpu_custom_call.1} parent=15 // pred_check_branch
          %277 = sbr.rel (%p275) target = $region24
        $region23: #{tpu_custom_call.1} parent=15 // pred_region
          %s278 = sand.u32 %s27, 1
          %s279 = scalar_lea.sflag [#allocation7], %s278
          %s280 = sand.u32 %s79, 1
          %s281 = smul.addr %s280, 8
          %s282 = scalar_lea.vmem [#allocation6], %s281
          %s284 = ssub.s32 128, 128
          %285 = vsyncadd %s279, %s284
          %s286 = smul.addr %s34, 2
          %s287 = sadd.s32 %s35, %s286
          %s288 = smul.addr %s287, 128
          %s289 = scalar_lea.hbm %s1, %s288
          %s291 = sshll.u32 %s282, 4
          %s292 = int_to_ptr.vmem [resolvable:$true] %s291
          %294 = dma.hbm_to_vmem [thread:$0]  %s289, 128, %s292, %s279
        $region24: #{tpu_custom_call.1} parent=15 // pred_fallthru
          _
        // Predicated region
        $region25: #{tpu_custom_call.1} parent=15 // pred_check
          %p295 = pneg %p117
        $region26: #{tpu_custom_call.1} parent=15 // pred_check_branch
          %297 = sbr.rel (%p295) target = $region28
        $region27: #{tpu_custom_call.1} parent=15 // pred_region
          #allocation16 [shape = 'u32[6]{0}', space=smem, size = 0x18, scoped, tag = 'DMA stride descriptor']
          %s298 = sand.u32 %s27, 1
          %s299 = scalar_lea.sflag [#allocation7], %s298
          %s300 = sand.u32 %s107, 1
          %s301 = smul.addr %s300, 64
          %s302 = scalar_lea.vmem [#allocation8], %s301
          %s303 = smul.u32 4, %s35
          %s305 = ssub.s32 1024, 1024
          %306 = vsyncadd %s299, %s305
          %s307 = smul.addr %s34, 16
          %s308 = sadd.s32 %s303, %s307
          %s309 = smul.addr %s308, 128
          %s310 = scalar_lea.hbm %s2, %s309
          %s312 = sshll.u32 1, 14
          %s313 = sxor.u32 4294967295, %s312
          %s315 = sld [smem:[#allocation0]]
          %s316 = sadd.s32 2, %s315
          %s318 = sshll.u32 7, 26
          %s319 = sxor.u32 4294967295, %s318
          %s320 = sand.u32 0, %s319
          %s321 = sshll.u32 %s316, 26
          %s322 = sor.u32 %s320, %s321
          %s323 = sshll.u32 %s302, 4
          %s324 = int_to_ptr.vmem [resolvable:$true] %s323
          %330 = sst [smem:[#allocation16]] 1024
          %s331 = scalar_lea.smem [#allocation16], 1
          %332 = sst [smem:[%s331]] 512
          %s333 = scalar_lea.smem [#allocation16], 2
          %334 = sst [smem:[%s333]] 4
          %s335 = scalar_lea.smem [#allocation16], 3
          %336 = sst [smem:[%s335]] 128
          %s337 = scalar_lea.smem [#allocation16], 4
          %338 = sst [smem:[%s337]] 128
          %s339 = scalar_lea.smem [#allocation16], 5
          %340 = sst [smem:[%s339]] 8
          %342 = dma.general %s310, 1024, %s324, %s299, 131072, [#allocation16], %s322, 0
        $region28: #{tpu_custom_call.1} parent=15 // pred_fallthru
          _
        // Predicated region
        $region29: #{tpu_custom_call.1} parent=15 // pred_check
          %p343 = pneg %p145
        $region30: #{tpu_custom_call.1} parent=15 // pred_check_branch
          %345 = sbr.rel (%p343) target = $region32
        $region31: #{tpu_custom_call.1} parent=15 // pred_region
          #allocation18 [shape = 'u32[6]{0}', space=smem, size = 0x18, scoped, tag = 'DMA stride descriptor']
          %s346 = sand.u32 %s27, 1
          %s347 = scalar_lea.sflag [#allocation10], %s346
          %s348 = sand.u32 %s135, 1
          %s349 = smul.addr %s348, 64
          %s350 = scalar_lea.vmem [#allocation9], %s349
          %s351 = smul.u32 4, %s35
          %s353 = ssub.s32 1024, 1024
          %354 = vsyncadd %s347, %s353
          %s355 = smul.addr %s34, 16
          %s356 = sadd.s32 %s351, %s355
          %s357 = smul.addr %s356, 128
          %s358 = scalar_lea.hbm %s3, %s357
          %s360 = sshll.u32 1, 14
          %s361 = sxor.u32 4294967295, %s360
          %s363 = sld [smem:[#allocation0]]
          %s364 = sadd.s32 2, %s363
          %s366 = sshll.u32 7, 26
          %s367 = sxor.u32 4294967295, %s366
          %s368 = sand.u32 0, %s367
          %s369 = sshll.u32 %s364, 26
          %s370 = sor.u32 %s368, %s369
          %s371 = sshll.u32 %s350, 4
          %s372 = int_to_ptr.vmem [resolvable:$true] %s371
          %378 = sst [smem:[#allocation18]] 1024
          %s379 = scalar_lea.smem [#allocation18], 1
          %380 = sst [smem:[%s379]] 512
          %s381 = scalar_lea.smem [#allocation18], 2
          %382 = sst [smem:[%s381]] 4
          %s383 = scalar_lea.smem [#allocation18], 3
          %384 = sst [smem:[%s383]] 128
          %s385 = scalar_lea.smem [#allocation18], 4
          %386 = sst [smem:[%s385]] 128
          %s387 = scalar_lea.smem [#allocation18], 5
          %388 = sst [smem:[%s387]] 8
          %390 = dma.general %s358, 1024, %s372, %s347, 131072, [#allocation18], %s370, 0
        $region32: #{tpu_custom_call.1} parent=15 // pred_fallthru
          _
        // Predicated region
        $region33: #{tpu_custom_call.1} parent=15 // pred_check
          %p391 = pneg %p173
        $region34: #{tpu_custom_call.1} parent=15 // pred_check_branch
          %393 = sbr.rel (%p391) target = $region36
        $region35: #{tpu_custom_call.1} parent=15 // pred_region
          #allocation20 [shape = 'u32[6]{0}', space=smem, size = 0x18, scoped, tag = 'DMA stride descriptor']
          %s394 = sand.u32 %s27, 1
          %s395 = scalar_lea.sflag [#allocation10], %s394
          %s396 = sand.u32 %s163, 1
          %s397 = smul.addr %s396, 192
          %s398 = scalar_lea.vmem [#allocation11], %s397
          %s399 = smul.u32 4, %s35
          %s401 = ssub.s32 3072, 3072
          %402 = vsyncadd %s395, %s401
          %s403 = smul.addr %s34, 48
          %s404 = sadd.s32 %s399, %s403
          %s405 = smul.addr %s404, 128
          %s406 = scalar_lea.hbm %s4, %s405
          %s408 = sshll.u32 1, 14
          %s409 = sxor.u32 4294967295, %s408
          %s411 = sld [smem:[#allocation0]]
          %s412 = sadd.s32 2, %s411
          %s414 = sshll.u32 7, 26
          %s415 = sxor.u32 4294967295, %s414
          %s416 = sand.u32 0, %s415
          %s417 = sshll.u32 %s412, 26
          %s418 = sor.u32 %s416, %s417
          %s419 = sshll.u32 %s398, 4
          %s420 = int_to_ptr.vmem [resolvable:$true] %s419
          %426 = sst [smem:[#allocation20]] 1024
          %s427 = scalar_lea.smem [#allocation20], 1
          %428 = sst [smem:[%s427]] 512
          %s429 = scalar_lea.smem [#allocation20], 2
          %430 = sst [smem:[%s429]] 4
          %s431 = scalar_lea.smem [#allocation20], 3
          %432 = sst [smem:[%s431]] 128
          %s433 = scalar_lea.smem [#allocation20], 4
          %434 = sst [smem:[%s433]] 128
          %s435 = scalar_lea.smem [#allocation20], 5
          %436 = sst [smem:[%s435]] 8
          %438 = dma.general %s406, 3072, %s420, %s395, 131072, [#allocation20], %s418, 0
        $region36: #{tpu_custom_call.1} parent=15 // pred_fallthru
          _
        // Predicated region
        $region37: #{tpu_custom_call.1} parent=15 // pred_check
          %p439 = pneg %p201
        $region38: #{tpu_custom_call.1} parent=15 // pred_check_branch
          %441 = sbr.rel (%p439) target = $region40
        $region39: #{tpu_custom_call.1} parent=15 // pred_region
          %s442 = sand.u32 %s191, 1
          %s443 = scalar_lea.sflag [#allocation13], %s442
          %s444 = sand.u32 %s191, 1
          %s445 = smul.addr %s444, 48
          %s446 = scalar_lea.vmem [#allocation12], %s445
          %s448 = ssub.s32 768, 768
          %449 = vsyncadd %s443, %s448
          %s450 = smul.addr %s34, 12
          %s451 = sadd.s32 %s35, %s450
          %s452 = smul.addr %s451, 128
          %s453 = scalar_lea.hbm %s5, %s452
          %s454 = sshll.u32 %s446, 4
          %s455 = int_to_ptr.vmem [resolvable:$true] %s454
          %460 = dma.hbm_to_vmem [thread:$0]  %s453, 768, %s455, %s443, 256, 128, 8
        $region40: #{tpu_custom_call.1} parent=15 // pred_fallthru
          _
      $region16: #{tpu_custom_call.1} parent=5 // pred_fallthru
        _
      %p461 = scmp.le.s32.totalorder 1, %s27
      %p462 = scmp.lt.s32.totalorder %s27, 5
      %p463 = pnand %p461, %p462
      %p464 = pneg %p463
      // Predicated region
      $region41: #{tpu_custom_call.1} parent=5 // pred_check
        _
      $region42: #{tpu_custom_call.1} parent=5 // pred_check_branch
        %466 = sbr.rel (%p463) target = $region44
      $region43: #{tpu_custom_call.1} parent=5 // pred_region
        %s467 = ssub.s32 %s27, 1
        %s468 = sand.u32 %s54, 1
        %s469 = scalar_lea.sflag [#allocation4], %s468
        %s470 = sand.u32 %s54, 1
        %s471 = smul.addr %s470, 32
        %s472 = scalar_lea.vmem [#allocation3], %s471
        // Predicated region
        $region45: #{tpu_custom_call.1} parent=43 // pred_check
          %p473 = pneg %p67
        $region46: #{tpu_custom_call.1} parent=43 // pred_check_branch
          %475 = sbr.rel (%p473) target = $region48
        $region47: #{tpu_custom_call.1} parent=43 // pred_region
          %476 = dma.done %s469, 512
        $region48: #{tpu_custom_call.1} parent=43 // pred_fallthru
          _
        %s477 = sand.u32 %s32, 1
        %s478 = scalar_lea.sflag [#allocation7], %s477
        %s479 = sand.u32 %s82, 1
        %s480 = smul.addr %s479, 8
        %s481 = scalar_lea.vmem [#allocation6], %s480
        // Predicated region
        $region49: #{tpu_custom_call.1} parent=43 // pred_check
          %p482 = pneg %p95
        $region50: #{tpu_custom_call.1} parent=43 // pred_check_branch
          %484 = sbr.rel (%p482) target = $region52
        $region51: #{tpu_custom_call.1} parent=43 // pred_region
          %485 = dma.done %s478, 128
        $region52: #{tpu_custom_call.1} parent=43 // pred_fallthru
          _
        %s486 = sand.u32 %s32, 1
        %s487 = scalar_lea.sflag [#allocation7], %s486
        %s488 = sand.u32 %s110, 1
        %s489 = smul.addr %s488, 64
        %s490 = scalar_lea.vmem [#allocation8], %s489
        // Predicated region
        $region53: #{tpu_custom_call.1} parent=43 // pred_check
          %p491 = pneg %p123
        $region54: #{tpu_custom_call.1} parent=43 // pred_check_branch
          %493 = sbr.rel (%p491) target = $region56
        $region55: #{tpu_custom_call.1} parent=43 // pred_region
          %494 = dma.done %s487, 1024
        $region56: #{tpu_custom_call.1} parent=43 // pred_fallthru
          _
        %s495 = sand.u32 %s32, 1
        %s496 = scalar_lea.sflag [#allocation10], %s495
        %s497 = sand.u32 %s138, 1
        %s498 = smul.addr %s497, 64
        %s499 = scalar_lea.vmem [#allocation9], %s498
        // Predicated region
        $region57: #{tpu_custom_call.1} parent=43 // pred_check
          %p500 = pneg %p151
        $region58: #{tpu_custom_call.1} parent=43 // pred_check_branch
          %502 = sbr.rel (%p500) target = $region60
        $region59: #{tpu_custom_call.1} parent=43 // pred_region
          %503 = dma.done %s496, 1024
        $region60: #{tpu_custom_call.1} parent=43 // pred_fallthru
          _
        %s504 = sand.u32 %s32, 1
        %s505 = scalar_lea.sflag [#allocation10], %s504
        %s506 = sand.u32 %s166, 1
        %s507 = smul.addr %s506, 192
        %s508 = scalar_lea.vmem [#allocation11], %s507
        // Predicated region
        $region61: #{tpu_custom_call.1} parent=43 // pred_check
          %p509 = pneg %p179
        $region62: #{tpu_custom_call.1} parent=43 // pred_check_branch
          %511 = sbr.rel (%p509) target = $region64
        $region63: #{tpu_custom_call.1} parent=43 // pred_region
          %512 = dma.done %s505, 3072
        $region64: #{tpu_custom_call.1} parent=43 // pred_fallthru
          _
        %s513 = sand.u32 %s194, 1
        %s514 = scalar_lea.sflag [#allocation13], %s513
        %s515 = sand.u32 %s194, 1
        %s516 = smul.addr %s515, 48
        %s517 = scalar_lea.vmem [#allocation12], %s516
        // Predicated region
        $region65: #{tpu_custom_call.1} parent=43 // pred_check
          %p518 = pneg %p207
        $region66: #{tpu_custom_call.1} parent=43 // pred_check_branch
          %520 = sbr.rel (%p518) target = $region68
        $region67: #{tpu_custom_call.1} parent=43 // pred_region
          %521 = dma.done %s514, 768
        $region68: #{tpu_custom_call.1} parent=43 // pred_fallthru
          _
        %s522 = sand.u32 %s54, 1
        %s523 = scalar_lea.sflag [#allocation4], %s522
        %s524 = sand.u32 %s54, 1
        %s525 = smul.addr %s524, 32
        %s526 = scalar_lea.vmem [#allocation3], %s525
        %p527 = pneg %p67
        %p528 = pneg %p64
        %s529 = sand.u32 %s32, 1
        %s530 = scalar_lea.sflag [#allocation7], %s529
        %s531 = sand.u32 %s82, 1
        %s532 = smul.addr %s531, 8
        %s533 = scalar_lea.vmem [#allocation6], %s532
        %p534 = pneg %p95
        %p535 = pneg %p92
        %s536 = sand.u32 %s32, 1
        %s537 = scalar_lea.sflag [#allocation7], %s536
        %s538 = sand.u32 %s110, 1
        %s539 = smul.addr %s538, 64
        %s540 = scalar_lea.vmem [#allocation8], %s539
        %p541 = pneg %p123
        %p542 = pneg %p120
        %s543 = sand.u32 %s32, 1
        %s544 = scalar_lea.sflag [#allocation10], %s543
        %s545 = sand.u32 %s138, 1
        %s546 = smul.addr %s545, 64
        %s547 = scalar_lea.vmem [#allocation9], %s546
        %p548 = pneg %p151
        %p549 = pneg %p148
        %s550 = sand.u32 %s32, 1
        %s551 = scalar_lea.sflag [#allocation10], %s550
        %s552 = sand.u32 %s166, 1
        %s553 = smul.addr %s552, 192
        %s554 = scalar_lea.vmem [#allocation11], %s553
        %p555 = pneg %p179
        %p556 = pneg %p176
        %s557 = sand.u32 %s194, 1
        %s558 = scalar_lea.sflag [#allocation13], %s557
        %s559 = sand.u32 %s194, 1
        %s560 = smul.addr %s559, 48
        %s561 = scalar_lea.vmem [#allocation12], %s560
        %p562 = pneg %p207
        %p563 = pneg %p204
        %p564 = pneg %p233
        %p565 = pneg %p230
        %s566 = sand.u32 %s220, 1
        %s567 = scalar_lea.sflag [#allocation5], %s566
        %s568 = sand.u32 %s220, 1
        %s569 = smul.addr %s568, 16
        %s570 = scalar_lea.vmem [#allocation14], %s569
        %s571 = smul.u32 4, %s37
        %s572 = smul.u32 4, %s37
        %s573 = smul.u32 4, %s37
        %s574 = smul.u32 4, %s37
        %p575 = scmp.eq.s32.totalorder %s37, 0
        // Predicated region
        $region69: #{tpu_custom_call.1} parent=43 // pred_check
          %p576 = pneg %p575
        $region70: #{tpu_custom_call.1} parent=43 // pred_check_branch
          %578 = sbr.rel (%p576) target = $region72
        $region71: #{tpu_custom_call.1} parent=43 // pred_region
          %579 = vst [vmem:[%s570] sm:$0xff] 0.0
          %580 = vst [vmem:[%s570 + $0x8] sm:$0xff] 0.0
        $region72: #{tpu_custom_call.1} parent=43 // pred_fallthru
          _
        %v581 = vld [vmem:[%s490] sm:$0xff]
        %v582 = vld [vmem:[%s490 + $0x8] sm:$0xff]
        %v583 = vld [vmem:[%s490 + $0x10] sm:$0xff]
        %v584 = vld [vmem:[%s490 + $0x18] sm:$0xff]
        %v585 = vld [vmem:[%s490 + $0x20] sm:$0xff]
        %v586 = vld [vmem:[%s490 + $0x28] sm:$0xff]
        %v587 = vld [vmem:[%s490 + $0x30] sm:$0xff]
        %v588 = vld [vmem:[%s490 + $0x38] sm:$0xff]
        %v589 = vld [vmem:[%s499] sm:$0xff]
        %v590 = vld [vmem:[%s499 + $0x8] sm:$0xff]
        %v591 = vld [vmem:[%s499 + $0x10] sm:$0xff]
        %v592 = vld [vmem:[%s499 + $0x18] sm:$0xff]
        %v593 = vld [vmem:[%s499 + $0x20] sm:$0xff]
        %v594 = vld [vmem:[%s499 + $0x28] sm:$0xff]
        %v595 = vld [vmem:[%s499 + $0x30] sm:$0xff]
        %v596 = vld [vmem:[%s499 + $0x38] sm:$0xff]
        %v597 = vsub.f32 %v581, %v589
        %v598 = vsub.f32 %v582, %v590
        %v599 = vsub.f32 %v583, %v591
        %v600 = vsub.f32 %v584, %v592
        %v601 = vsub.f32 %v585, %v593
        %v602 = vsub.f32 %v586, %v594
        %v603 = vsub.f32 %v587, %v595
        %v604 = vsub.f32 %v588, %v596
        %v605 = vld [vmem:[%s570] sm:$0x1]
        %v606 = vmul.f32 %v597, %v597
        %v607 = vmul.f32 %v598, %v598
        %v608 = vmul.f32 %v599, %v599
        %v609 = vmul.f32 %v600, %v600
        %v610 = vmul.f32 %v601, %v601
        %v611 = vmul.f32 %v602, %v602
        %v612 = vmul.f32 %v603, %v603
        %v613 = vmul.f32 %v604, %v604
        %v614 = vadd.f32 %v606, %v607
        %v615 = vadd.f32 %v614, %v608
        %v616 = vadd.f32 %v615, %v609
        %v617 = vadd.f32 %v616, %v610
        %v618 = vadd.f32 %v617, %v611
        %v619 = vadd.f32 %v618, %v612
        %v620 = vadd.f32 %v619, %v613
        %v621 = vrot.slane %v620, 4
        %v622 = vadd.f32 %v620, %v621
        %v623 = vrot.slane %v622, 2
        %v624 = vadd.f32 %v622, %v623
        %v625 = vrot.slane %v624, 1
        %v626 = vadd.f32 %v624, %v625
        %v627 = vadd.f32 %v605, %v626
        %628 = vst [vmem:[%s570] sm:$0x1] %v627
        %629 = vrot.lane.b32.xlu0 %v597, 127
        %v630 = vpop.permute.xlu0 %629
        %631 = vrot.lane.b32.xlu0 %v598, 127
        %v632 = vpop.permute.xlu0 %631
        %633 = vrot.lane.b32.xlu0 %v599, 127
        %v634 = vpop.permute.xlu0 %633
        %635 = vrot.lane.b32.xlu0 %v600, 127
        %v636 = vpop.permute.xlu0 %635
        %v637 = vsub.f32 %v630, %v597
        %v638 = vsub.f32 %v632, %v598
        %v639 = vsub.f32 %v634, %v599
        %v640 = vsub.f32 %v636, %v600
        %v641 = vmul.f32 %v637, %v637
        %v642 = vmul.f32 %v638, %v638
        %v643 = vmul.f32 %v639, %v639
        %v644 = vmul.f32 %v640, %v640
        %v645 = vadd.f32 %v641, %v642
        %v646 = vadd.f32 %v645, %v643
        %v647 = vadd.f32 %v646, %v644
        %v648 = vrot.slane %v647, 4
        %v649 = vadd.f32 %v647, %v648
        %v650 = vrot.slane %v649, 2
        %v651 = vadd.f32 %v649, %v650
        %v652 = vrot.slane %v651, 1
        %v653 = vadd.f32 %v651, %v652
        %658 = vrot.lane.b32.xlu0 %v597, 1
        %v659 = vpop.permute.xlu0 %658
        %660 = vrot.lane.b32.xlu0 %v598, 1
        %v661 = vpop.permute.xlu0 %660
        %662 = vrot.lane.b32.xlu0 %v599, 1
        %v663 = vpop.permute.xlu0 %662
        %664 = vrot.lane.b32.xlu0 %v600, 1
        %v665 = vpop.permute.xlu0 %664
        %v670 = vsub.f32 %v597, %v659
        %v671 = vsub.f32 %v598, %v661
        %v672 = vsub.f32 %v599, %v663
        %v673 = vsub.f32 %v600, %v665
        %v674 = vlaneseq
        %v675 = vand.u32 %v674, 127
        %vm676 = vcmp.eq.s32.totalorder %v675, 0
        %678 = vset.pattern.permute.xlu0 0
        %679 = vperm.xlu0 %678, %v670
        %v680 = vpop.permute.xlu0 %679
        %683 = vset.pattern.permute.xlu0 0
        %684 = vperm.xlu0 %683, %v671
        %v685 = vpop.permute.xlu0 %684
        %688 = vset.pattern.permute.xlu0 0
        %689 = vperm.xlu0 %688, %v672
        %v690 = vpop.permute.xlu0 %689
        %693 = vset.pattern.permute.xlu0 0
        %694 = vperm.xlu0 %693, %v673
        %v695 = vpop.permute.xlu0 %694
        %v697 = vsel %vm676, %v680, 0.0
        %v698 = vsel %vm676, %v685, 0.0
        %v699 = vsel %vm676, %v690, 0.0
        %v700 = vsel %vm676, %v695, 0.0
        %v701 = vld [vmem:[%s570 + $0x1] sm:$0x1]
        %v702 = vmul.f32 %v697, %v697
        %v703 = vmul.f32 %v698, %v698
        %v704 = vmul.f32 %v699, %v699
        %v705 = vmul.f32 %v700, %v700
        %v706 = vadd.f32 %v702, %v703
        %v707 = vadd.f32 %v706, %v704
        %v708 = vadd.f32 %v707, %v705
        %v709 = vrot.slane %v708, 4
        %v710 = vadd.f32 %v708, %v709
        %v711 = vrot.slane %v710, 2
        %v712 = vadd.f32 %v710, %v711
        %v713 = vrot.slane %v712, 1
        %v714 = vadd.f32 %v712, %v713
        %v715 = vsub.f32 %v653, %v714
        %v716 = vadd.f32 %v701, %v715
        %717 = vst [vmem:[%s570 + $0x1] sm:$0x1] %v716
        %v718 = vrot.slane %v601, 1
        %v719 = vrot.slane %v602, 1
        %v720 = vrot.slane %v603, 1
        %v721 = vrot.slane %v604, 1
        %v722 = vlaneseq
        %v723 = vshrl.u32 %v722, 7
        %vm724 = vcmp.lt.s32.totalorder %v723, 7
        %v725 = vsel %vm724, %v720, %v721
        %v726 = vsel %vm724, %v719, %v720
        %v727 = vsel %vm724, %v718, %v719
        %v728 = vsel %vm724, %v721, %v718
        %v729 = vsub.f32 %v727, %v601
        %v730 = vsub.f32 %v726, %v602
        %v731 = vsub.f32 %v725, %v603
        %v732 = vsub.f32 %v728, %v604
        %v733 = vmul.f32 %v729, %v729
        %v734 = vmul.f32 %v730, %v730
        %v735 = vmul.f32 %v731, %v731
        %v736 = vmul.f32 %v732, %v732
        %v737 = vadd.f32 %v733, %v734
        %v738 = vadd.f32 %v737, %v735
        %v739 = vadd.f32 %v738, %v736
        %v740 = vrot.slane %v739, 4
        %v741 = vadd.f32 %v739, %v740
        %v742 = vrot.slane %v741, 2
        %v743 = vadd.f32 %v741, %v742
        %v744 = vrot.slane %v743, 1
        %v745 = vadd.f32 %v743, %v744
        %v747 = vrot.slane %v604, 7
        %v749 = vsub.f32 %v601, %v747
        %v750 = vld [vmem:[%s570 + $0x2] sm:$0x1]
        %v751 = vmul.f32 %v749, %v749
        %v752 = vsub.f32 %v745, %v751
        %v753 = vadd.f32 %v750, %v752
        %754 = vst [vmem:[%s570 + $0x2] sm:$0x1] %v753
        %p755 = scmp.gt.s32.totalorder %s37, 0
        // Predicated region
        $region73: #{tpu_custom_call.1} parent=43 // pred_check
          %p756 = pneg %p755
        $region74: #{tpu_custom_call.1} parent=43 // pred_check_branch
          %758 = sbr.rel (%p756) target = $region76
        $region75: #{tpu_custom_call.1} parent=43 // pred_region
          %v759 = vld [vmem:[#allocation2] sm:$0x1]
          %v760 = vsub.f32 %v601, %v759
          %v761 = vld [vmem:[%s570 + $0x2] sm:$0x1]
          %v762 = vmul.f32 %v760, %v760
          %v763 = vadd.f32 %v761, %v762
          %764 = vst [vmem:[%s570 + $0x2] sm:$0x1] %v763
        $region76: #{tpu_custom_call.1} parent=43 // pred_fallthru
          _
        %765 = vst [vmem:[#allocation2 - $0x7] sm:$0x80] %v604
        %v766 = vld [vmem:[%s472] sm:$0xff]
        %v767 = vld [vmem:[%s472 + $0x8] sm:$0xff]
        %v768 = vld [vmem:[%s472 + $0x10] sm:$0xff]
        %v769 = vld [vmem:[%s472 + $0x18] sm:$0xff]
        %v770 = vld [vmem:[%s481] sm:$0xff]
        %v771 = vunpack.c.0.s8 %v770
        %v772 = vunpack.c.1.s8 %v770
        %v773 = vunpack.c.2.s8 %v770
        %v774 = vunpack.c.3.s8 %v770
        %v775 = vcvt.s32.f32 %v771
        %v776 = vcvt.s32.f32 %v772
        %v777 = vcvt.s32.f32 %v773
        %v778 = vcvt.s32.f32 %v774
        %v779 = vlog2.pop %v766
        %v780 = vmul.f32 %v779, 0.6931472
        %v781 = vlog2.pop %v767
        %v782 = vmul.f32 %v781, 0.6931472
        %v783 = vlog2.pop %v768
        %v784 = vmul.f32 %v783, 0.6931472
        %v785 = vlog2.pop %v769
        %v786 = vmul.f32 %v785, 0.6931472
        %v787 = vmax.f32 %v780, -100.0
        %v788 = vmax.f32 %v782, -100.0
        %v789 = vmax.f32 %v784, -100.0
        %v790 = vmax.f32 %v786, -100.0
        %v791 = vsub.f32 1.0, %v766
        %v792 = vsub.f32 1.0, %v767
        %v793 = vsub.f32 1.0, %v768
        %v794 = vsub.f32 1.0, %v769
        %v795 = vlog2.pop %v791
        %v796 = vmul.f32 %v795, 0.6931472
        %v797 = vlog2.pop %v792
        %v798 = vmul.f32 %v797, 0.6931472
        %v799 = vlog2.pop %v793
        %v800 = vmul.f32 %v799, 0.6931472
        %v801 = vlog2.pop %v794
        %v802 = vmul.f32 %v801, 0.6931472
        %v803 = vmax.f32 %v796, -100.0
        %v804 = vmax.f32 %v798, -100.0
        %v805 = vmax.f32 %v800, -100.0
        %v806 = vmax.f32 %v802, -100.0
        %v807 = vmul.f32 %v775, %v787
        %v808 = vmul.f32 %v776, %v788
        %v809 = vmul.f32 %v777, %v789
        %v810 = vmul.f32 %v778, %v790
        %v811 = vsub.f32 1.0, %v775
        %v812 = vsub.f32 1.0, %v776
        %v813 = vsub.f32 1.0, %v777
        %v814 = vsub.f32 1.0, %v778
        %v815 = vmul.f32 %v811, %v803
        %v816 = vmul.f32 %v812, %v804
        %v817 = vmul.f32 %v813, %v805
        %v818 = vmul.f32 %v814, %v806
        %v819 = vadd.f32 %v807, %v815
        %v820 = vadd.f32 %v808, %v816
        %v821 = vadd.f32 %v809, %v817
        %v822 = vadd.f32 %v810, %v818
        %v823 = vsub.f32 0.0, %v819
        %v824 = vsub.f32 0.0, %v820
        %v825 = vsub.f32 0.0, %v821
        %v826 = vsub.f32 0.0, %v822
        %v827 = vld [vmem:[%s570 + $0x3] sm:$0x1]
        %v828 = vadd.f32 %v823, %v824
        %v829 = vadd.f32 %v828, %v825
        %v830 = vadd.f32 %v829, %v826
        %v831 = vrot.slane %v830, 4
        %v832 = vadd.f32 %v830, %v831
        %v833 = vrot.slane %v832, 2
        %v834 = vadd.f32 %v832, %v833
        %v835 = vrot.slane %v834, 1
        %v836 = vadd.f32 %v834, %v835
        %v837 = vadd.f32 %v827, %v836
        %838 = vst [vmem:[%s570 + $0x3] sm:$0x1] %v837
        %v839 = vld [vmem:[%s570 + $0x4] sm:$0x1]
        %v840 = vmul.f32 %v766, %v775
        %v841 = vmul.f32 %v767, %v776
        %v842 = vmul.f32 %v768, %v777
        %v843 = vmul.f32 %v769, %v778
        %v844 = vadd.f32 %v840, %v841
        %v845 = vadd.f32 %v844, %v842
        %v846 = vadd.f32 %v845, %v843
        %v847 = vrot.slane %v846, 4
        %v848 = vadd.f32 %v846, %v847
        %v849 = vrot.slane %v848, 2
        %v850 = vadd.f32 %v848, %v849
        %v851 = vrot.slane %v850, 1
        %v852 = vadd.f32 %v850, %v851
        %v853 = vadd.f32 %v839, %v852
        %854 = vst [vmem:[%s570 + $0x4] sm:$0x1] %v853
        %v855 = vld [vmem:[%s570 + $0x5] sm:$0x1]
        %v856 = vadd.f32 %v766, %v767
        %v857 = vadd.f32 %v856, %v768
        %v858 = vadd.f32 %v857, %v769
        %v859 = vrot.slane %v858, 4
        %v860 = vadd.f32 %v858, %v859
        %v861 = vrot.slane %v860, 2
        %v862 = vadd.f32 %v860, %v861
        %v863 = vrot.slane %v862, 1
        %v864 = vadd.f32 %v862, %v863
        %v865 = vadd.f32 %v855, %v864
        %866 = vst [vmem:[%s570 + $0x5] sm:$0x1] %v865
        %v867 = vld [vmem:[%s570 + $0x6] sm:$0x1]
        %v868 = vadd.f32 %v775, %v776
        %v869 = vadd.f32 %v868, %v777
        %v870 = vadd.f32 %v869, %v778
        %v871 = vrot.slane %v870, 4
        %v872 = vadd.f32 %v870, %v871
        %v873 = vrot.slane %v872, 2
        %v874 = vadd.f32 %v872, %v873
        %v875 = vrot.slane %v874, 1
        %v876 = vadd.f32 %v874, %v875
        %v877 = vadd.f32 %v867, %v876
        %878 = vst [vmem:[%s570 + $0x6] sm:$0x1] %v877
        %v879 = vld [vmem:[%s508] sm:$0xff]
        %v880 = vld [vmem:[%s508 + $0x8] sm:$0xff]
        %v881 = vld [vmem:[%s508 + $0x10] sm:$0xff]
        %v882 = vld [vmem:[%s508 + $0x18] sm:$0xff]
        %v883 = vld [vmem:[%s508 + $0x20] sm:$0xff]
        %v884 = vld [vmem:[%s508 + $0x28] sm:$0xff]
        %v885 = vld [vmem:[%s508 + $0x30] sm:$0xff]
        %v886 = vld [vmem:[%s508 + $0x38] sm:$0xff]
        %v887 = vld [vmem:[%s508 + $0x40] sm:$0xff]
        %v888 = vld [vmem:[%s508 + $0x48] sm:$0xff]
        %v889 = vld [vmem:[%s508 + $0x50] sm:$0xff]
        %v890 = vld [vmem:[%s508 + $0x58] sm:$0xff]
        %v891 = vld [vmem:[%s508 + $0x60] sm:$0xff]
        %v892 = vld [vmem:[%s508 + $0x68] sm:$0xff]
        %v893 = vld [vmem:[%s508 + $0x70] sm:$0xff]
        %v894 = vld [vmem:[%s508 + $0x78] sm:$0xff]
        %v895 = vld [vmem:[%s508 + $0x80] sm:$0xff]
        %v896 = vld [vmem:[%s508 + $0x88] sm:$0xff]
        %v897 = vld [vmem:[%s508 + $0x90] sm:$0xff]
        %v898 = vld [vmem:[%s508 + $0x98] sm:$0xff]
        %v899 = vld [vmem:[%s508 + $0xa0] sm:$0xff]
        %v900 = vld [vmem:[%s508 + $0xa8] sm:$0xff]
        %v901 = vld [vmem:[%s508 + $0xb0] sm:$0xff]
        %v902 = vld [vmem:[%s508 + $0xb8] sm:$0xff]
        %v903 = vld [vmem:[%s517] sm:$0xff]
        %v904 = vld [vmem:[%s517 + $0x8] sm:$0xff]
        %v905 = vld [vmem:[%s517 + $0x10] sm:$0xff]
        %v906 = vld [vmem:[%s517 + $0x18] sm:$0xff]
        %v907 = vld [vmem:[%s517 + $0x20] sm:$0xff]
        %v908 = vld [vmem:[%s517 + $0x28] sm:$0xff]
        %v909 = vunpack.c.0.s8 %v903
        %v910 = vunpack.c.1.s8 %v903
        %v911 = vunpack.c.2.s8 %v903
        %v912 = vunpack.c.3.s8 %v903
        %v913 = vunpack.c.0.s8 %v904
        %v914 = vunpack.c.1.s8 %v904
        %v915 = vunpack.c.2.s8 %v904
        %v916 = vunpack.c.3.s8 %v904
        %v917 = vunpack.c.0.s8 %v905
        %v918 = vunpack.c.1.s8 %v905
        %v919 = vunpack.c.2.s8 %v905
        %v920 = vunpack.c.3.s8 %v905
        %v921 = vunpack.c.0.s8 %v906
        %v922 = vunpack.c.1.s8 %v906
        %v923 = vunpack.c.2.s8 %v906
        %v924 = vunpack.c.3.s8 %v906
        %v925 = vunpack.c.0.s8 %v907
        %v926 = vunpack.c.1.s8 %v907
        %v927 = vunpack.c.2.s8 %v907
        %v928 = vunpack.c.3.s8 %v907
        %v929 = vunpack.c.0.s8 %v908
        %v930 = vunpack.c.1.s8 %v908
        %v931 = vunpack.c.2.s8 %v908
        %v932 = vunpack.c.3.s8 %v908
        %v933 = vcvt.s32.f32 %v909
        %v934 = vcvt.s32.f32 %v910
        %v935 = vcvt.s32.f32 %v911
        %v936 = vcvt.s32.f32 %v912
        %v937 = vcvt.s32.f32 %v913
        %v938 = vcvt.s32.f32 %v914
        %v939 = vcvt.s32.f32 %v915
        %v940 = vcvt.s32.f32 %v916
        %v941 = vcvt.s32.f32 %v917
        %v942 = vcvt.s32.f32 %v918
        %v943 = vcvt.s32.f32 %v919
        %v944 = vcvt.s32.f32 %v920
        %v945 = vcvt.s32.f32 %v921
        %v946 = vcvt.s32.f32 %v922
        %v947 = vcvt.s32.f32 %v923
        %v948 = vcvt.s32.f32 %v924
        %v949 = vcvt.s32.f32 %v925
        %v950 = vcvt.s32.f32 %v926
        %v951 = vcvt.s32.f32 %v927
        %v952 = vcvt.s32.f32 %v928
        %v953 = vcvt.s32.f32 %v929
        %v954 = vcvt.s32.f32 %v930
        %v955 = vcvt.s32.f32 %v931
        %v956 = vcvt.s32.f32 %v932
        %v957 = vld [vmem:[%s570 + $0x7] sm:$0x1]
        %v958 = vmul.f32 %v879, %v933
        %v959 = vmul.f32 %v880, %v934
        %v960 = vmul.f32 %v881, %v935
        %v961 = vmul.f32 %v882, %v936
        %v962 = vmul.f32 %v883, %v937
        %v963 = vmul.f32 %v884, %v938
        %v964 = vmul.f32 %v885, %v939
        %v965 = vmul.f32 %v886, %v940
        %v966 = vmul.f32 %v887, %v941
        %v967 = vmul.f32 %v888, %v942
        %v968 = vmul.f32 %v889, %v943
        %v969 = vmul.f32 %v890, %v944
        %v970 = vmul.f32 %v891, %v945
        %v971 = vmul.f32 %v892, %v946
        %v972 = vmul.f32 %v893, %v947
        %v973 = vmul.f32 %v894, %v948
        %v974 = vmul.f32 %v895, %v949
        %v975 = vmul.f32 %v896, %v950
        %v976 = vmul.f32 %v897, %v951
        %v977 = vmul.f32 %v898, %v952
        %v978 = vmul.f32 %v899, %v953
        %v979 = vmul.f32 %v900, %v954
        %v980 = vmul.f32 %v901, %v955
        %v981 = vmul.f32 %v902, %v956
        %v982 = vadd.f32 %v958, %v959
        %v983 = vadd.f32 %v982, %v960
        %v984 = vadd.f32 %v983, %v961
        %v985 = vadd.f32 %v984, %v962
        %v986 = vadd.f32 %v985, %v963
        %v987 = vadd.f32 %v986, %v964
        %v988 = vadd.f32 %v987, %v965
        %v989 = vadd.f32 %v988, %v966
        %v990 = vadd.f32 %v989, %v967
        %v991 = vadd.f32 %v990, %v968
        %v992 = vadd.f32 %v991, %v969
        %v993 = vadd.f32 %v992, %v970
        %v994 = vadd.f32 %v993, %v971
        %v995 = vadd.f32 %v994, %v972
        %v996 = vadd.f32 %v995, %v973
        %v997 = vadd.f32 %v996, %v974
        %v998 = vadd.f32 %v997, %v975
        %v999 = vadd.f32 %v998, %v976
        %v1000 = vadd.f32 %v999, %v977
        %v1001 = vadd.f32 %v1000, %v978
        %v1002 = vadd.f32 %v1001, %v979
        %v1003 = vadd.f32 %v1002, %v980
        %v1004 = vadd.f32 %v1003, %v981
        %v1005 = vrot.slane %v1004, 4
        %v1006 = vadd.f32 %v1004, %v1005
        %v1007 = vrot.slane %v1006, 2
        %v1008 = vadd.f32 %v1006, %v1007
        %v1009 = vrot.slane %v1008, 1
        %v1010 = vadd.f32 %v1008, %v1009
        %v1011 = vadd.f32 %v957, %v1010
        %1012 = vst [vmem:[%s570 + $0x7] sm:$0x1] %v1011
        %v1013 = vld [vmem:[%s570 + $0x8] sm:$0x1]
        %v1014 = vadd.f32 %v879, %v880
        %v1015 = vadd.f32 %v1014, %v881
        %v1016 = vadd.f32 %v1015, %v882
        %v1017 = vadd.f32 %v1016, %v883
        %v1018 = vadd.f32 %v1017, %v884
        %v1019 = vadd.f32 %v1018, %v885
        %v1020 = vadd.f32 %v1019, %v886
        %v1021 = vadd.f32 %v1020, %v887
        %v1022 = vadd.f32 %v1021, %v888
        %v1023 = vadd.f32 %v1022, %v889
        %v1024 = vadd.f32 %v1023, %v890
        %v1025 = vadd.f32 %v1024, %v891
        %v1026 = vadd.f32 %v1025, %v892
        %v1027 = vadd.f32 %v1026, %v893
        %v1028 = vadd.f32 %v1027, %v894
        %v1029 = vadd.f32 %v1028, %v895
        %v1030 = vadd.f32 %v1029, %v896
        %v1031 = vadd.f32 %v1030, %v897
        %v1032 = vadd.f32 %v1031, %v898
        %v1033 = vadd.f32 %v1032, %v899
        %v1034 = vadd.f32 %v1033, %v900
        %v1035 = vadd.f32 %v1034, %v901
        %v1036 = vadd.f32 %v1035, %v902
        %v1037 = vrot.slane %v1036, 4
        %v1038 = vadd.f32 %v1036, %v1037
        %v1039 = vrot.slane %v1038, 2
        %v1040 = vadd.f32 %v1038, %v1039
        %v1041 = vrot.slane %v1040, 1
        %v1042 = vadd.f32 %v1040, %v1041
        %v1043 = vadd.f32 %v1013, %v1042
        %1044 = vst [vmem:[%s570 + $0x8] sm:$0x1] %v1043
        %v1045 = vld [vmem:[%s570 + $0x9] sm:$0x1]
        %v1046 = vadd.f32 %v933, %v934
        %v1047 = vadd.f32 %v1046, %v935
        %v1048 = vadd.f32 %v1047, %v936
        %v1049 = vadd.f32 %v1048, %v937
        %v1050 = vadd.f32 %v1049, %v938
        %v1051 = vadd.f32 %v1050, %v939
        %v1052 = vadd.f32 %v1051, %v940
        %v1053 = vadd.f32 %v1052, %v941
        %v1054 = vadd.f32 %v1053, %v942
        %v1055 = vadd.f32 %v1054, %v943
        %v1056 = vadd.f32 %v1055, %v944
        %v1057 = vadd.f32 %v1056, %v945
        %v1058 = vadd.f32 %v1057, %v946
        %v1059 = vadd.f32 %v1058, %v947
        %v1060 = vadd.f32 %v1059, %v948
        %v1061 = vadd.f32 %v1060, %v949
        %v1062 = vadd.f32 %v1061, %v950
        %v1063 = vadd.f32 %v1062, %v951
        %v1064 = vadd.f32 %v1063, %v952
        %v1065 = vadd.f32 %v1064, %v953
        %v1066 = vadd.f32 %v1065, %v954
        %v1067 = vadd.f32 %v1066, %v955
        %v1068 = vadd.f32 %v1067, %v956
        %v1069 = vrot.slane %v1068, 4
        %v1070 = vadd.f32 %v1068, %v1069
        %v1071 = vrot.slane %v1070, 2
        %v1072 = vadd.f32 %v1070, %v1071
        %v1073 = vrot.slane %v1072, 1
        %v1074 = vadd.f32 %v1072, %v1073
        %v1075 = vadd.f32 %v1045, %v1074
        %1076 = vst [vmem:[%s570 + $0x9] sm:$0x1] %v1075
        %v1077 = vadd.f32 %v879, 1e-08
        %v1078 = vadd.f32 %v880, 1e-08
        %v1079 = vadd.f32 %v881, 1e-08
        %v1080 = vadd.f32 %v882, 1e-08
        %v1081 = vadd.f32 %v883, 1e-08
        %v1082 = vadd.f32 %v884, 1e-08
        %v1083 = vadd.f32 %v885, 1e-08
        %v1084 = vadd.f32 %v886, 1e-08
        %v1085 = vadd.f32 %v887, 1e-08
        %v1086 = vadd.f32 %v888, 1e-08
        %v1087 = vadd.f32 %v889, 1e-08
        %v1088 = vadd.f32 %v890, 1e-08
        %v1089 = vadd.f32 %v891, 1e-08
        %v1090 = vadd.f32 %v892, 1e-08
        %v1091 = vadd.f32 %v893, 1e-08
        %v1092 = vadd.f32 %v894, 1e-08
        %v1093 = vadd.f32 %v895, 1e-08
        %v1094 = vadd.f32 %v896, 1e-08
        %v1095 = vadd.f32 %v897, 1e-08
        %v1096 = vadd.f32 %v898, 1e-08
        %v1097 = vadd.f32 %v899, 1e-08
        %v1098 = vadd.f32 %v900, 1e-08
        %v1099 = vadd.f32 %v901, 1e-08
        %v1100 = vadd.f32 %v902, 1e-08
        %v1101 = vlog2.pop %v1077
        %v1102 = vmul.f32 %v1101, 0.6931472
        %v1103 = vlog2.pop %v1078
        %v1104 = vmul.f32 %v1103, 0.6931472
        %v1105 = vlog2.pop %v1079
        %v1106 = vmul.f32 %v1105, 0.6931472
        %v1107 = vlog2.pop %v1080
        %v1108 = vmul.f32 %v1107, 0.6931472
        %v1109 = vlog2.pop %v1081
        %v1110 = vmul.f32 %v1109, 0.6931472
        %v1111 = vlog2.pop %v1082
        %v1112 = vmul.f32 %v1111, 0.6931472
        %v1113 = vlog2.pop %v1083
        %v1114 = vmul.f32 %v1113, 0.6931472
        %v1115 = vlog2.pop %v1084
        %v1116 = vmul.f32 %v1115, 0.6931472
        %v1117 = vlog2.pop %v1085
        %v1118 = vmul.f32 %v1117, 0.6931472
        %v1119 = vlog2.pop %v1086
        %v1120 = vmul.f32 %v1119, 0.6931472
        %v1121 = vlog2.pop %v1087
        %v1122 = vmul.f32 %v1121, 0.6931472
        %v1123 = vlog2.pop %v1088
        %v1124 = vmul.f32 %v1123, 0.6931472
        %v1125 = vlog2.pop %v1089
        %v1126 = vmul.f32 %v1125, 0.6931472
        %v1127 = vlog2.pop %v1090
        %v1128 = vmul.f32 %v1127, 0.6931472
        %v1129 = vlog2.pop %v1091
        %v1130 = vmul.f32 %v1129, 0.6931472
        %v1131 = vlog2.pop %v1092
        %v1132 = vmul.f32 %v1131, 0.6931472
        %v1133 = vlog2.pop %v1093
        %v1134 = vmul.f32 %v1133, 0.6931472
        %v1135 = vlog2.pop %v1094
        %v1136 = vmul.f32 %v1135, 0.6931472
        %v1137 = vlog2.pop %v1095
        %v1138 = vmul.f32 %v1137, 0.6931472
        %v1139 = vlog2.pop %v1096
        %v1140 = vmul.f32 %v1139, 0.6931472
        %v1141 = vlog2.pop %v1097
        %v1142 = vmul.f32 %v1141, 0.6931472
        %v1143 = vlog2.pop %v1098
        %v1144 = vmul.f32 %v1143, 0.6931472
        %v1145 = vlog2.pop %v1099
        %v1146 = vmul.f32 %v1145, 0.6931472
        %v1147 = vlog2.pop %v1100
        %v1148 = vmul.f32 %v1147, 0.6931472
        %v1149 = vld [vmem:[%s570 + $0xa] sm:$0x3f]
        %v1150 = vmul.f32 %v933, %v1102
        %v1151 = vmul.f32 %v934, %v1104
        %v1152 = vmul.f32 %v935, %v1106
        %v1153 = vmul.f32 %v936, %v1108
        %v1154 = vmul.f32 %v937, %v1110
        %v1155 = vmul.f32 %v938, %v1112
        %v1156 = vmul.f32 %v939, %v1114
        %v1157 = vmul.f32 %v940, %v1116
        %v1158 = vmul.f32 %v941, %v1118
        %v1159 = vmul.f32 %v942, %v1120
        %v1160 = vmul.f32 %v943, %v1122
        %v1161 = vmul.f32 %v944, %v1124
        %v1162 = vmul.f32 %v945, %v1126
        %v1163 = vmul.f32 %v946, %v1128
        %v1164 = vmul.f32 %v947, %v1130
        %v1165 = vmul.f32 %v948, %v1132
        %v1166 = vmul.f32 %v949, %v1134
        %v1167 = vmul.f32 %v950, %v1136
        %v1168 = vmul.f32 %v951, %v1138
        %v1169 = vmul.f32 %v952, %v1140
        %v1170 = vmul.f32 %v953, %v1142
        %v1171 = vmul.f32 %v954, %v1144
        %v1172 = vmul.f32 %v955, %v1146
        %v1173 = vmul.f32 %v956, %v1148
        %v1174 = vadd.f32 %v1150, %v1151
        %v1175 = vadd.f32 %v1174, %v1152
        %v1176 = vadd.f32 %v1175, %v1153
        %v1177 = vrot.slane %v1176, 4
        %v1178 = vadd.f32 %v1176, %v1177
        %v1179 = vrot.slane %v1178, 2
        %v1180 = vadd.f32 %v1178, %v1179
        %v1181 = vrot.slane %v1180, 1
        %v1182 = vadd.f32 %v1180, %v1181
        %v1183 = vadd.f32 %v1154, %v1155
        %v1184 = vadd.f32 %v1183, %v1156
        %v1185 = vadd.f32 %v1184, %v1157
        %v1186 = vrot.slane %v1185, 4
        %v1187 = vadd.f32 %v1185, %v1186
        %v1188 = vrot.slane %v1187, 2
        %v1189 = vadd.f32 %v1187, %v1188
        %v1190 = vrot.slane %v1189, 1
        %v1191 = vadd.f32 %v1189, %v1190
        %v1192 = vadd.f32 %v1158, %v1159
        %v1193 = vadd.f32 %v1192, %v1160
        %v1194 = vadd.f32 %v1193, %v1161
        %v1195 = vrot.slane %v1194, 4
        %v1196 = vadd.f32 %v1194, %v1195
        %v1197 = vrot.slane %v1196, 2
        %v1198 = vadd.f32 %v1196, %v1197
        %v1199 = vrot.slane %v1198, 1
        %v1200 = vadd.f32 %v1198, %v1199
        %v1201 = vadd.f32 %v1162, %v1163
        %v1202 = vadd.f32 %v1201, %v1164
        %v1203 = vadd.f32 %v1202, %v1165
        %v1204 = vrot.slane %v1203, 4
        %v1205 = vadd.f32 %v1203, %v1204
        %v1206 = vrot.slane %v1205, 2
        %v1207 = vadd.f32 %v1205, %v1206
        %v1208 = vrot.slane %v1207, 1
        %v1209 = vadd.f32 %v1207, %v1208
        %v1210 = vadd.f32 %v1166, %v1167
        %v1211 = vadd.f32 %v1210, %v1168
        %v1212 = vadd.f32 %v1211, %v1169
        %v1213 = vrot.slane %v1212, 4
        %v1214 = vadd.f32 %v1212, %v1213
        %v1215 = vrot.slane %v1214, 2
        %v1216 = vadd.f32 %v1214, %v1215
        %v1217 = vrot.slane %v1216, 1
        %v1218 = vadd.f32 %v1216, %v1217
        %v1219 = vadd.f32 %v1170, %v1171
        %v1220 = vadd.f32 %v1219, %v1172
        %v1221 = vadd.f32 %v1220, %v1173
        %v1222 = vrot.slane %v1221, 4
        %v1223 = vadd.f32 %v1221, %v1222
        %v1224 = vrot.slane %v1223, 2
        %v1225 = vadd.f32 %v1223, %v1224
        %v1226 = vrot.slane %v1225, 1
        %v1227 = vadd.f32 %v1225, %v1226
        %vm1234 = vcmask 1041409
        %v1235 = vsel %vm1234, %v1191, %v1182
        %vm1236 = vcmask 1042434
        %v1237 = vsel %vm1236, %v1200, %v1235
        %vm1238 = vcmask 1043459
        %v1239 = vsel %vm1238, %v1209, %v1237
        %vm1240 = vcmask 1044484
        %v1241 = vsel %vm1240, %v1218, %v1239
        %vm1242 = vcmask 1045509
        %v1243 = vsel %vm1242, %v1227, %v1241
        %v1245 = vadd.f32 %v1149, %v1243
        %1246 = vst [vmem:[%s570 + $0xa] sm:$0x3f] %v1245
        %s1247 = sand.u32 %s220, 1
        %s1248 = scalar_lea.sflag [#allocation5], %s1247
        %s1249 = sand.u32 %s220, 1
        %s1250 = smul.addr %s1249, 16
        %s1251 = scalar_lea.vmem [#allocation14], %s1250
        // Predicated region
        $region77: #{tpu_custom_call.1} parent=43 // pred_check
          %p1252 = pneg %p230
        $region78: #{tpu_custom_call.1} parent=43 // pred_check_branch
          %1254 = sbr.rel (%p1252) target = $region80
        $region79: #{tpu_custom_call.1} parent=43 // pred_region
          %s1256 = ssub.s32 256, 256
          %1257 = vsyncadd %s1248, %s1256
          %s1258 = smul.addr %s36, 2
          %s1259 = smul.addr %s1258, 128
          %s1260 = scalar_lea.hbm %s6, %s1259
          %s1261 = sshll.u32 %s1251, 4
          %s1262 = int_to_ptr.vmem [resolvable:$true] %s1261
          %1267 = dma.vmem_to_hbm [thread:$0]  %s1262, 256, %s1260, %s1248, 128, 128, 8
        $region80: #{tpu_custom_call.1} parent=43 // pred_fallthru
          _
      $region44: #{tpu_custom_call.1} parent=5 // pred_fallthru
        _
      %p1268 = scmp.le.s32.totalorder 2, %s27
      // Predicated region
      $region81: #{tpu_custom_call.1} parent=5 // pred_check
        %p1269 = pneg %p1268
      $region82: #{tpu_custom_call.1} parent=5 // pred_check_branch
        %1271 = sbr.rel (%p1269) target = $region84
      $region83: #{tpu_custom_call.1} parent=5 // pred_region
        %s1272 = ssub.s32 %s27, 2
        // Predicated region
        $region85: #{tpu_custom_call.1} parent=83 // pred_check
          %p1273 = pneg %p236
        $region86: #{tpu_custom_call.1} parent=83 // pred_check_branch
          %1275 = sbr.rel (%p1273) target = $region88
        $region87: #{tpu_custom_call.1} parent=83 // pred_region
          %s1276 = sand.u32 %s221, 1
          %s1277 = scalar_lea.sflag [#allocation5], %s1276
          %s1278 = sand.u32 %s221, 1
          %s1279 = smul.addr %s1278, 16
          %s1280 = scalar_lea.vmem [#allocation14], %s1279
          %1281 = dma.done %s1277, 256
        $region88: #{tpu_custom_call.1} parent=83 // pred_fallthru
          _
      $region84: #{tpu_custom_call.1} parent=5 // pred_fallthru
        _
    $region6: #{tpu_custom_call.1} parent=1 // loop_footer
      %s31 = sadd.s32 1, %s27
    $region7: #{tpu_custom_call.1} parent=1 // loop_footer_branch
      %26 = sbr.rel target = $region3
    $region8: #{tpu_custom_call.1} parent=1 // loop_exit
      _
    %1282 = vsyncpa [#allocation4], 1
    %s1283 = scalar_lea.sflag [#allocation4], 1
    %1284 = vsyncpa %s1283, 1
    %1285 = vsyncpa [#allocation7], 1
    %s1286 = scalar_lea.sflag [#allocation7], 1
    %1287 = vsyncpa %s1286, 1
    %1288 = vsyncpa [#allocation10], 1
    %s1289 = scalar_lea.sflag [#allocation10], 1
    %1290 = vsyncpa %s1289, 1
    %1291 = vsyncpa [#allocation13], 1
    %s1292 = scalar_lea.sflag [#allocation13], 1
    %1293 = vsyncpa %s1292, 1
    %1294 = vsyncpa [#allocation5], 1
    %s1295 = scalar_lea.sflag [#allocation5], 1
    %1296 = vsyncpa %s1295, 1

</llo_original>
